<compile_context>
chip_gen: v6e
topology: v6e:2x2x1
jax: 0.10.0
libtpu: 0.0.40
codegen_flags: <defaults>
</compile_context>

<pallas_src>
import functools

import jax
import jax.numpy as jnp
import numpy as np
from jax import lax
from jax.experimental import pallas as pl
from jax.experimental.pallas import tpu as pltpu


def _round_up(n, m):
    return ((n + m - 1) // m) * m


# ----------------------------- Pallas kernel --------------------------------
def rnn_kernel(x_ref,      # (T*Bp, D)   time-major, batch-padded, flattened
               wih0_ref,   # (D, Hp)     W_ih_l0^T (hidden zero-padded)
               whh0_ref,   # (Hp, Hp)    W_hh_l0^T
               b0_ref,     # (1, Hp)     b_ih_l0 + b_hh_l0
               w1_ref,     # (2*Hp, Hp)  [W_ih_l1^T ; W_hh_l1^T]  (fused)
               b1_ref,     # (1, Hp)     b_ih_l1 + b_hh_l1
               wfc_ref,    # (Hp, O)
               bfc_ref,    # (1, O)
               out_ref,    # (Bp, O)
               xw0_ref,    # VMEM scratch (T*Bp, Hp)
               *, seq_len, batch_p):
    Bp = batch_p
    Hp = whh0_ref.shape[0]

    # Hoisted, time-independent layer-0 input projection: one big matmul.
    xw0_ref[...] = (jnp.dot(x_ref[...], wih0_ref[...],
                            preferred_element_type=jnp.float32)
                    + b0_ref[...])

    # Hoist weight loads and the bias broadcast out of the unrolled recurrence
    # (JAX does not CSE broadcast_in_dim inside the loop body).
    whh0 = whh0_ref[...]
    w1 = w1_ref[...]
    b1 = jnp.broadcast_to(b1_ref[...], (Bp, Hp))

    def step(t, carry):
        h1, h2 = carry
        base = pl.multiple_of(t * Bp, Bp)
        # layer 0: h1 = tanh(x_t @ W_ih0^T + b0 + h1 @ W_hh0^T)
        pre1 = xw0_ref[pl.ds(base, Bp), :] + jnp.dot(
            h1, whh0, preferred_element_type=jnp.float32)
        h1 = jnp.tanh(pre1)
        # layer 1 (fused ih/hh): h2 = tanh([h1, h2] @ [[W_ih1^T],[W_hh1^T]] + b1)
        cat = jnp.concatenate([h1, h2], axis=-1)             # (Bp, 2*Hp)
        pre2 = jnp.dot(cat, w1, preferred_element_type=jnp.float32) + b1
        h2 = jnp.tanh(pre2)
        return h1, h2

    init = (jnp.zeros((Bp, Hp), jnp.float32),
            jnp.zeros((Bp, Hp), jnp.float32))
    _, h2 = lax.fori_loop(0, seq_len, step, init, unroll=True)

    # fc on the last timestep's top-layer hidden state.
    out_ref[...] = (jnp.dot(h2, wfc_ref[...],
                            preferred_element_type=jnp.float32)
                    + bfc_ref[...]).astype(out_ref.dtype)


# ------------------------------- Wrapper -------------------------------------
def rnn_model_forward(x_btd, params):
    """x_btd: (B, T, D) float32 (PyTorch batch_first layout)."""
    B, T, D = x_btd.shape
    H = params["whh0"].shape[0]
    O = params["wfc"].shape[1]

    Bp = _round_up(max(B, 8), 8)        # sublane-friendly batch
    Hp = _round_up(max(H, 128), 128)    # lane-friendly hidden size
    dH = Hp - H

    # time-major, batch zero-padded, flattened to one (T*Bp, D) slab
    x_tbd = jnp.transpose(x_btd, (1, 0, 2))
    x_tbd = jnp.pad(x_tbd, ((0, 0), (0, Bp - B), (0, 0)))
    x2d = x_tbd.reshape(T * Bp, D)

    # Zero-pad the hidden dimension: padded hidden units stay exactly zero.
    wih0 = jnp.pad(params["wih0"], ((0, 0), (0, dH)))           # (D, Hp)
    whh0 = jnp.pad(params["whh0"], ((0, dH), (0, dH)))          # (Hp, Hp)
    b0 = jnp.pad(params["b0"], ((0, 0), (0, dH)))               # (1, Hp)
    wih1 = jnp.pad(params["wih1"], ((0, dH), (0, dH)))          # (Hp, Hp)
    whh1 = jnp.pad(params["whh1"], ((0, dH), (0, dH)))          # (Hp, Hp)
    w1 = jnp.concatenate([wih1, whh1], axis=0)                  # (2*Hp, Hp)
    b1 = jnp.pad(params["b1"], ((0, 0), (0, dH)))               # (1, Hp)
    wfc = jnp.pad(params["wfc"], ((0, dH), (0, 0)))             # (Hp, O)
    bfc = params["bfc"]                                         # (1, O)

    kernel = functools.partial(rnn_kernel, seq_len=T, batch_p=Bp)

    out_p = pl.pallas_call(
        kernel,
        out_shape=jax.ShapeDtypeStruct((Bp, O), jnp.float32),
        scratch_shapes=[pltpu.VMEM((T * Bp, Hp), jnp.float32)],  # hoisted x@W_ih0
    )(x2d, wih0, whh0, b0, w1, b1, wfc, bfc)
    return out_p[:B, :]


# ------------------------- deterministic parameters --------------------------
def init_params(key, input_size, hidden_size, output_size):
    ks = jax.random.split(key, 10)
    bound = 1.0 / np.sqrt(hidden_size)
    u = lambda k, shape: jax.random.uniform(k, shape, jnp.float32, -bound, bound)
    # PyTorch stores W_ih (H, D), W_hh (H, H); pre-transpose to (D, H)/(H, H).
    wih0 = u(ks[0], (hidden_size, input_size)).T
    whh0 = u(ks[1], (hidden_size, hidden_size)).T
    b0 = (u(ks[2], (hidden_size,)) + u(ks[3], (hidden_size,))).reshape(1, -1)
    wih1 = u(ks[4], (hidden_size, hidden_size)).T
    whh1 = u(ks[5], (hidden_size, hidden_size)).T
    b1 = (u(ks[6], (hidden_size,)) + u(ks[7], (hidden_size,))).reshape(1, -1)
    wfc = u(ks[8], (output_size, hidden_size)).T
    bfc = u(ks[9], (output_size,)).reshape(1, -1)
    return dict(wih0=wih0, whh0=whh0, b0=b0,
                wih1=wih1, whh1=whh1, b1=b1,
                wfc=wfc, bfc=bfc)


# --------------------------- pure-JAX reference -------------------------------
def rnn_model_reference(x_btd, p):
    B, T, D = x_btd.shape
    H = p["whh0"].shape[0]
    h1 = jnp.zeros((B, H), jnp.float32)
    h2 = jnp.zeros((B, H), jnp.float32)
    for t in range(T):
        x_t = x_btd[:, t, :]
        h1 = jnp.tanh(x_t @ p["wih0"] + h1 @ p["whh0"] + p["b0"])
        h2 = jnp.tanh(h1 @ p["wih1"] + h2 @ p["whh1"] + p["b1"])
    return h2 @ p["wfc"] + p["bfc"]


if __name__ == "__main__":
    # shapes consistent with the module: seq_len=10 dataset -> use T=8,
    # input_size -> 32, hidden_size=64, num_layers=2, output_size=1
    B, T, D, H, O = 2, 8, 32, 64, 1

    key = jax.random.PRNGKey(0)
    k_x, k_p = jax.random.split(key)
    x = jax.random.normal(k_x, (B, T, D), jnp.float32)
    params = init_params(k_p, D, H, O)

    out = rnn_model_forward(x, params)
    out = jax.block_until_ready(out)

    ref = rnn_model_reference(x, params)
    np.testing.assert_allclose(np.asarray(out), np.asarray(ref),
                               rtol=1e-4, atol=1e-4)
    assert out.shape == (B, O)
    print("KERNEL_OK")
</pallas_src>

<mosaic_0001>
module attributes {stable_mosaic.version = 11 : i64} {
  func.func @rnn_kernel(%arg0: memref<64x32xf32, #tpu.memory_space<vmem>>, %arg1: memref<32x128xf32, #tpu.memory_space<vmem>>, %arg2: memref<128x128xf32, #tpu.memory_space<vmem>>, %arg3: memref<1x128xf32, #tpu.memory_space<vmem>>, %arg4: memref<256x128xf32, #tpu.memory_space<vmem>>, %arg5: memref<1x128xf32, #tpu.memory_space<vmem>>, %arg6: memref<128x1xf32, #tpu.memory_space<vmem>>, %arg7: memref<1x1xf32, #tpu.memory_space<vmem>>, %arg8: memref<8x1xf32, #tpu.memory_space<vmem>>, %arg9: memref<64x128xf32, #tpu.memory_space<vmem>>) attributes {dimension_semantics = [], scalar_prefetch = 0 : i64, scratch_operands = 1 : i64, tpu.core_type = #tpu.core_type<tc>} {
    %c0 = arith.constant 0 : index
    %c0_0 = arith.constant 0 : index
    %0 = vector.load %arg0[%c0, %c0_0] : memref<64x32xf32, #tpu.memory_space<vmem>>, vector<64x32xf32>
    %c0_1 = arith.constant 0 : index
    %c0_2 = arith.constant 0 : index
    %1 = vector.load %arg1[%c0_1, %c0_2] : memref<32x128xf32, #tpu.memory_space<vmem>>, vector<32x128xf32>
    %cst = arith.constant dense<0.000000e+00> : vector<64x128xf32>
    %2 = tpu.matmul %0, %1, %cst {dimension_numbers = #tpu.dot_dimension_numbers<[1], [0], [0], [1], [0, 0, 1, 1], [], []>} : vector<64x32xf32>, vector<32x128xf32>, vector<64x128xf32> -> vector<64x128xf32>
    %c0_3 = arith.constant 0 : index
    %c0_4 = arith.constant 0 : index
    %3 = vector.load %arg3[%c0_3, %c0_4] : memref<1x128xf32, #tpu.memory_space<vmem>>, vector<1x128xf32>
    %4 = vector.broadcast %3 : vector<1x128xf32> to vector<64x128xf32>
    %5 = arith.addf %2, %4 : vector<64x128xf32>
    %c0_5 = arith.constant 0 : index
    %c0_6 = arith.constant 0 : index
    %6 = vector.load %arg9[%c0_5, %c0_6] : memref<64x128xf32, #tpu.memory_space<vmem>>, vector<64x128xf32>
    tpu.vector_store %arg9[%c0_5, %c0_6], %5 {strides = array<i32>} : memref<64x128xf32, #tpu.memory_space<vmem>>, vector<64x128xf32>,
    %c0_7 = arith.constant 0 : index
    %c0_8 = arith.constant 0 : index
    %7 = vector.load %arg2[%c0_7, %c0_8] : memref<128x128xf32, #tpu.memory_space<vmem>>, vector<128x128xf32>
    %c0_9 = arith.constant 0 : index
    %c0_10 = arith.constant 0 : index
    %8 = vector.load %arg4[%c0_9, %c0_10] : memref<256x128xf32, #tpu.memory_space<vmem>>, vector<256x128xf32>
    %c0_11 = arith.constant 0 : index
    %c0_12 = arith.constant 0 : index
    %9 = vector.load %arg5[%c0_11, %c0_12] : memref<1x128xf32, #tpu.memory_space<vmem>>, vector<1x128xf32>
    %10 = vector.shape_cast %9 : vector<1x128xf32> to vector<1x128xf32>
    %11 = vector.broadcast %10 : vector<1x128xf32> to vector<8x128xf32>
    %cst_13 = arith.constant 0.000000e+00 : f32
    %12 = vector.broadcast %cst_13 : f32 to vector<8x128xf32>
    %cst_14 = arith.constant 0.000000e+00 : f32
    %13 = vector.broadcast %cst_14 : f32 to vector<8x128xf32>
    %c0_i32 = arith.constant 0 : i32
    %c8_i32 = arith.constant 8 : i32
    %14 = arith.muli %c0_i32, %c8_i32 : i32
    %15 = tpu.assume_multiple %14, 8 : i32
    %16 = arith.index_cast %15 : i32 to index
    %c0_15 = arith.constant 0 : index
    %17 = vector.load %arg9[%16, %c0_15] : memref<64x128xf32, #tpu.memory_space<vmem>>, vector<8x128xf32>
    %cst_16 = arith.constant dense<0.000000e+00> : vector<8x128xf32>
    %18 = tpu.matmul %12, %7, %cst_16 {dimension_numbers = #tpu.dot_dimension_numbers<[1], [0], [0], [1], [0, 0, 1, 1], [], []>} : vector<8x128xf32>, vector<128x128xf32>, vector<8x128xf32> -> vector<8x128xf32>
    %19 = arith.addf %17, %18 : vector<8x128xf32>
    %20 = math.tanh %19 : vector<8x128xf32>
    %21 = tpu.concatenate %20, %13 in 1 : vector<8x128xf32>, vector<8x128xf32> -> vector<8x256xf32>
    %cst_17 = arith.constant dense<0.000000e+00> : vector<8x128xf32>
    %22 = tpu.matmul %21, %8, %cst_17 {dimension_numbers = #tpu.dot_dimension_numbers<[1], [0], [0], [1], [0, 0, 1, 1], [], []>} : vector<8x256xf32>, vector<256x128xf32>, vector<8x128xf32> -> vector<8x128xf32>
    %23 = arith.addf %22, %11 : vector<8x128xf32>
    %24 = math.tanh %23 : vector<8x128xf32>
    %c1_i32 = arith.constant 1 : i32
    %c8_i32_18 = arith.constant 8 : i32
    %25 = arith.muli %c1_i32, %c8_i32_18 : i32
    %26 = tpu.assume_multiple %25, 8 : i32
    %27 = arith.index_cast %26 : i32 to index
    %c0_19 = arith.constant 0 : index
    %28 = vector.load %arg9[%27, %c0_19] : memref<64x128xf32, #tpu.memory_space<vmem>>, vector<8x128xf32>
    %cst_20 = arith.constant dense<0.000000e+00> : vector<8x128xf32>
    %29 = tpu.matmul %20, %7, %cst_20 {dimension_numbers = #tpu.dot_dimension_numbers<[1], [0], [0], [1], [0, 0, 1, 1], [], []>} : vector<8x128xf32>, vector<128x128xf32>, vector<8x128xf32> -> vector<8x128xf32>
    %30 = arith.addf %28, %29 : vector<8x128xf32>
    %31 = math.tanh %30 : vector<8x128xf32>
    %32 = tpu.concatenate %31, %24 in 1 : vector<8x128xf32>, vector<8x128xf32> -> vector<8x256xf32>
    %cst_21 = arith.constant dense<0.000000e+00> : vector<8x128xf32>
    %33 = tpu.matmul %32, %8, %cst_21 {dimension_numbers = #tpu.dot_dimension_numbers<[1], [0], [0], [1], [0, 0, 1, 1], [], []>} : vector<8x256xf32>, vector<256x128xf32>, vector<8x128xf32> -> vector<8x128xf32>
    %34 = arith.addf %33, %11 : vector<8x128xf32>
    %35 = math.tanh %34 : vector<8x128xf32>
    %c2_i32 = arith.constant 2 : i32
    %c8_i32_22 = arith.constant 8 : i32
    %36 = arith.muli %c2_i32, %c8_i32_22 : i32
    %37 = tpu.assume_multiple %36, 8 : i32
    %38 = arith.index_cast %37 : i32 to index
    %c0_23 = arith.constant 0 : index
    %39 = vector.load %arg9[%38, %c0_23] : memref<64x128xf32, #tpu.memory_space<vmem>>, vector<8x128xf32>
    %cst_24 = arith.constant dense<0.000000e+00> : vector<8x128xf32>
    %40 = tpu.matmul %31, %7, %cst_24 {dimension_numbers = #tpu.dot_dimension_numbers<[1], [0], [0], [1], [0, 0, 1, 1], [], []>} : vector<8x128xf32>, vector<128x128xf32>, vector<8x128xf32> -> vector<8x128xf32>
    %41 = arith.addf %39, %40 : vector<8x128xf32>
    %42 = math.tanh %41 : vector<8x128xf32>
    %43 = tpu.concatenate %42, %35 in 1 : vector<8x128xf32>, vector<8x128xf32> -> vector<8x256xf32>
    %cst_25 = arith.constant dense<0.000000e+00> : vector<8x128xf32>
    %44 = tpu.matmul %43, %8, %cst_25 {dimension_numbers = #tpu.dot_dimension_numbers<[1], [0], [0], [1], [0, 0, 1, 1], [], []>} : vector<8x256xf32>, vector<256x128xf32>, vector<8x128xf32> -> vector<8x128xf32>
    %45 = arith.addf %44, %11 : vector<8x128xf32>
    %46 = math.tanh %45 : vector<8x128xf32>
    %c3_i32 = arith.constant 3 : i32
    %c8_i32_26 = arith.constant 8 : i32
    %47 = arith.muli %c3_i32, %c8_i32_26 : i32
    %48 = tpu.assume_multiple %47, 8 : i32
    %49 = arith.index_cast %48 : i32 to index
    %c0_27 = arith.constant 0 : index
    %50 = vector.load %arg9[%49, %c0_27] : memref<64x128xf32, #tpu.memory_space<vmem>>, vector<8x128xf32>
    %cst_28 = arith.constant dense<0.000000e+00> : vector<8x128xf32>
    %51 = tpu.matmul %42, %7, %cst_28 {dimension_numbers = #tpu.dot_dimension_numbers<[1], [0], [0], [1], [0, 0, 1, 1], [], []>} : vector<8x128xf32>, vector<128x128xf32>, vector<8x128xf32> -> vector<8x128xf32>
    %52 = arith.addf %50, %51 : vector<8x128xf32>
    %53 = math.tanh %52 : vector<8x128xf32>
    %54 = tpu.concatenate %53, %46 in 1 : vector<8x128xf32>, vector<8x128xf32> -> vector<8x256xf32>
    %cst_29 = arith.constant dense<0.000000e+00> : vector<8x128xf32>
    %55 = tpu.matmul %54, %8, %cst_29 {dimension_numbers = #tpu.dot_dimension_numbers<[1], [0], [0], [1], [0, 0, 1, 1], [], []>} : vector<8x256xf32>, vector<256x128xf32>, vector<8x128xf32> -> vector<8x128xf32>
    %56 = arith.addf %55, %11 : vector<8x128xf32>
    %57 = math.tanh %56 : vector<8x128xf32>
    %c4_i32 = arith.constant 4 : i32
    %c8_i32_30 = arith.constant 8 : i32
    %58 = arith.muli %c4_i32, %c8_i32_30 : i32
    %59 = tpu.assume_multiple %58, 8 : i32
    %60 = arith.index_cast %59 : i32 to index
    %c0_31 = arith.constant 0 : index
    %61 = vector.load %arg9[%60, %c0_31] : memref<64x128xf32, #tpu.memory_space<vmem>>, vector<8x128xf32>
    %cst_32 = arith.constant dense<0.000000e+00> : vector<8x128xf32>
    %62 = tpu.matmul %53, %7, %cst_32 {dimension_numbers = #tpu.dot_dimension_numbers<[1], [0], [0], [1], [0, 0, 1, 1], [], []>} : vector<8x128xf32>, vector<128x128xf32>, vector<8x128xf32> -> vector<8x128xf32>
    %63 = arith.addf %61, %62 : vector<8x128xf32>
    %64 = math.tanh %63 : vector<8x128xf32>
    %65 = tpu.concatenate %64, %57 in 1 : vector<8x128xf32>, vector<8x128xf32> -> vector<8x256xf32>
    %cst_33 = arith.constant dense<0.000000e+00> : vector<8x128xf32>
    %66 = tpu.matmul %65, %8, %cst_33 {dimension_numbers = #tpu.dot_dimension_numbers<[1], [0], [0], [1], [0, 0, 1, 1], [], []>} : vector<8x256xf32>, vector<256x128xf32>, vector<8x128xf32> -> vector<8x128xf32>
    %67 = arith.addf %66, %11 : vector<8x128xf32>
    %68 = math.tanh %67 : vector<8x128xf32>
    %c5_i32 = arith.constant 5 : i32
    %c8_i32_34 = arith.constant 8 : i32
    %69 = arith.muli %c5_i32, %c8_i32_34 : i32
    %70 = tpu.assume_multiple %69, 8 : i32
    %71 = arith.index_cast %70 : i32 to index
    %c0_35 = arith.constant 0 : index
    %72 = vector.load %arg9[%71, %c0_35] : memref<64x128xf32, #tpu.memory_space<vmem>>, vector<8x128xf32>
    %cst_36 = arith.constant dense<0.000000e+00> : vector<8x128xf32>
    %73 = tpu.matmul %64, %7, %cst_36 {dimension_numbers = #tpu.dot_dimension_numbers<[1], [0], [0], [1], [0, 0, 1, 1], [], []>} : vector<8x128xf32>, vector<128x128xf32>, vector<8x128xf32> -> vector<8x128xf32>
    %74 = arith.addf %72, %73 : vector<8x128xf32>
    %75 = math.tanh %74 : vector<8x128xf32>
    %76 = tpu.concatenate %75, %68 in 1 : vector<8x128xf32>, vector<8x128xf32> -> vector<8x256xf32>
    %cst_37 = arith.constant dense<0.000000e+00> : vector<8x128xf32>
    %77 = tpu.matmul %76, %8, %cst_37 {dimension_numbers = #tpu.dot_dimension_numbers<[1], [0], [0], [1], [0, 0, 1, 1], [], []>} : vector<8x256xf32>, vector<256x128xf32>, vector<8x128xf32> -> vector<8x128xf32>
    %78 = arith.addf %77, %11 : vector<8x128xf32>
    %79 = math.tanh %78 : vector<8x128xf32>
    %c6_i32 = arith.constant 6 : i32
    %c8_i32_38 = arith.constant 8 : i32
    %80 = arith.muli %c6_i32, %c8_i32_38 : i32
    %81 = tpu.assume_multiple %80, 8 : i32
    %82 = arith.index_cast %81 : i32 to index
    %c0_39 = arith.constant 0 : index
    %83 = vector.load %arg9[%82, %c0_39] : memref<64x128xf32, #tpu.memory_space<vmem>>, vector<8x128xf32>
    %cst_40 = arith.constant dense<0.000000e+00> : vector<8x128xf32>
    %84 = tpu.matmul %75, %7, %cst_40 {dimension_numbers = #tpu.dot_dimension_numbers<[1], [0], [0], [1], [0, 0, 1, 1], [], []>} : vector<8x128xf32>, vector<128x128xf32>, vector<8x128xf32> -> vector<8x128xf32>
    %85 = arith.addf %83, %84 : vector<8x128xf32>
    %86 = math.tanh %85 : vector<8x128xf32>
    %87 = tpu.concatenate %86, %79 in 1 : vector<8x128xf32>, vector<8x128xf32> -> vector<8x256xf32>
    %cst_41 = arith.constant dense<0.000000e+00> : vector<8x128xf32>
    %88 = tpu.matmul %87, %8, %cst_41 {dimension_numbers = #tpu.dot_dimension_numbers<[1], [0], [0], [1], [0, 0, 1, 1], [], []>} : vector<8x256xf32>, vector<256x128xf32>, vector<8x128xf32> -> vector<8x128xf32>
    %89 = arith.addf %88, %11 : vector<8x128xf32>
    %90 = math.tanh %89 : vector<8x128xf32>
    %c7_i32 = arith.constant 7 : i32
    %c8_i32_42 = arith.constant 8 : i32
    %91 = arith.muli %c7_i32, %c8_i32_42 : i32
    %92 = tpu.assume_multiple %91, 8 : i32
    %93 = arith.index_cast %92 : i32 to index
    %c0_43 = arith.constant 0 : index
    %94 = vector.load %arg9[%93, %c0_43] : memref<64x128xf32, #tpu.memory_space<vmem>>, vector<8x128xf32>
    %cst_44 = arith.constant dense<0.000000e+00> : vector<8x128xf32>
    %95 = tpu.matmul %86, %7, %cst_44 {dimension_numbers = #tpu.dot_dimension_numbers<[1], [0], [0], [1], [0, 0, 1, 1], [], []>} : vector<8x128xf32>, vector<128x128xf32>, vector<8x128xf32> -> vector<8x128xf32>
    %96 = arith.addf %94, %95 : vector<8x128xf32>
    %97 = math.tanh %96 : vector<8x128xf32>
    %98 = tpu.concatenate %97, %90 in 1 : vector<8x128xf32>, vector<8x128xf32> -> vector<8x256xf32>
    %cst_45 = arith.constant dense<0.000000e+00> : vector<8x128xf32>
    %99 = tpu.matmul %98, %8, %cst_45 {dimension_numbers = #tpu.dot_dimension_numbers<[1], [0], [0], [1], [0, 0, 1, 1], [], []>} : vector<8x256xf32>, vector<256x128xf32>, vector<8x128xf32> -> vector<8x128xf32>
    %100 = arith.addf %99, %11 : vector<8x128xf32>
    %101 = math.tanh %100 : vector<8x128xf32>
    %c8_i32_46 = arith.constant 8 : i32
    %c0_47 = arith.constant 0 : index
    %c0_48 = arith.constant 0 : index
    %102 = vector.load %arg6[%c0_47, %c0_48] : memref<128x1xf32, #tpu.memory_space<vmem>>, vector<128x1xf32>
    %cst_49 = arith.constant dense<0.000000e+00> : vector<8x1xf32>
    %103 = tpu.matmul %101, %102, %cst_49 {dimension_numbers = #tpu.dot_dimension_numbers<[1], [0], [0], [1], [0, 0, 1, 1], [], []>} : vector<8x128xf32>, vector<128x1xf32>, vector<8x1xf32> -> vector<8x1xf32>
    %c0_50 = arith.constant 0 : index
    %c0_51 = arith.constant 0 : index
    %104 = vector.load %arg7[%c0_50, %c0_51] : memref<1x1xf32, #tpu.memory_space<vmem>>, vector<1x1xf32>
    %105 = vector.broadcast %104 : vector<1x1xf32> to vector<8x1xf32>
    %106 = arith.addf %103, %105 : vector<8x1xf32>
    %c0_52 = arith.constant 0 : index
    %c0_53 = arith.constant 0 : index
    %107 = vector.load %arg8[%c0_52, %c0_53] : memref<8x1xf32, #tpu.memory_space<vmem>>, vector<8x1xf32>
    tpu.vector_store %arg8[%c0_52, %c0_53], %106 {strides = array<i32>} : memref<8x1xf32, #tpu.memory_space<vmem>>, vector<8x1xf32>,
    return
  }
}

</mosaic_0001>

<llo_original>
// kernel: tpu_custom_call.1
$region0: #{tpu_custom_call.1}
  #allocation0 [shape = 'u32[]', space=smem, size = 0x4, offset = 0x4, fixed_abs, tag = 'smem constant byte address 0x4 - core index']
  #allocation1 [shape = 'u32[144,128]{1,0:T(1,128)}', space=vmem, size = 0x12000, scoped, tag = 'internal scratch']
  #allocation2 [shape = 'f32[64,128]{1,0:T(8,128)}', space=vmem, size = 0x8000, scoped, tag = 'scratch operand']
  #allocation3 [shape = 'f32[1,1]{1,0:T(1,128)S(1)}', space=vmem, size = 0x200, scoped, tag = 'scoped memory for tpu_custom_call.1']
  %s0 = inlined_call_operand.vmem [shape: f32[64,32], index: 0, kind: input, shape index: {}]
  %s1 = inlined_call_operand.vmem [shape: f32[32,128], index: 1, kind: input, shape index: {}]
  %s2 = inlined_call_operand.vmem [shape: f32[128,128], index: 2, kind: input, shape index: {}]
  %s3 = inlined_call_operand.vmem [shape: f32[1,128], index: 3, kind: input, shape index: {}]
  %s4 = inlined_call_operand.hbm [shape: f32[256,128], index: 4, kind: input, shape index: {}]
  %s5 = inlined_call_operand.vmem [shape: f32[1,128], index: 5, kind: input, shape index: {}]
  %s6 = inlined_call_operand.vmem [shape: f32[128,1], index: 6, kind: input, shape index: {}]
  %s7 = inlined_call_operand.<no memory space> [shape: f32[1,1], index: 7, kind: input, shape index: {}]
  %s8 = inlined_call_operand.vmem [shape: f32[8,1], index: 8, kind: output, shape index: {}]
  %s9 = sld [smem:[#allocation0]]
  $region46: #{tpu_custom_call.1} parent=0
    _
  %s11 = ssub.s32 1, %s9
  %s12 = scalar_select 0, %s11, %s9
  %v13 = vstv %s7
  %14 = vst [vmem:[#allocation3] sm:$0x1] %v13
  $region1: #{tpu_custom_call.1} parent=0
    #allocation4 [shape = 'u8[131072]{0}', space=vmem, size = 0x20000, scoped, tag = 'input window, operand 4, single buffered']
    #allocation5 [shape = 's32[1]{0}', space=sflag, size = 0x4, scoped, tag = 'scoped memory for tpu_custom_call.1']
    %15 = vsyncpa [#allocation5], 0
    // Predicated region
    $region2: #{tpu_custom_call.1} parent=1 // pred_check
      _
    $region3: #{tpu_custom_call.1} parent=1 // pred_check_branch
      %17 = sbr.rel (0) target = $region5
    $region4: #{tpu_custom_call.1} parent=1 // pred_region
      _
    $region5: #{tpu_custom_call.1} parent=1 // pred_fallthru
      _
    // Predicated region
    $region6: #{tpu_custom_call.1} parent=1 // pred_check
      _
    $region7: #{tpu_custom_call.1} parent=1 // pred_check_branch
      %19 = sbr.rel (0) target = $region9
    $region8: #{tpu_custom_call.1} parent=1 // pred_region
      _
    $region9: #{tpu_custom_call.1} parent=1 // pred_fallthru
      _
    // Predicated region
    $region10: #{tpu_custom_call.1} parent=1 // pred_check
      _
    $region11: #{tpu_custom_call.1} parent=1 // pred_check_branch
      %21 = sbr.rel (0) target = $region13
    $region12: #{tpu_custom_call.1} parent=1 // pred_region
      _
    $region13: #{tpu_custom_call.1} parent=1 // pred_fallthru
      _
    // Predicated region
    $region14: #{tpu_custom_call.1} parent=1 // pred_check
      _
    $region15: #{tpu_custom_call.1} parent=1 // pred_check_branch
      %23 = sbr.rel (0) target = $region17
    $region16: #{tpu_custom_call.1} parent=1 // pred_region
      _
    $region17: #{tpu_custom_call.1} parent=1 // pred_fallthru
      _
    // Predicated region
    $region18: #{tpu_custom_call.1} parent=1 // pred_check
      _
    $region19: #{tpu_custom_call.1} parent=1 // pred_check_branch
      %25 = sbr.rel (0) target = $region21
    $region20: #{tpu_custom_call.1} parent=1 // pred_region
      %s27 = ssub.s32 4096, 4096
      %28 = vsyncadd [#allocation5], %s27
      %s29 = sshll.u32 [#allocation4], 4
      %s30 = int_to_ptr.vmem [resolvable:$true] %s29
      %35 = dma.hbm_to_vmem [thread:$0]  %s4, 4096, %s30, [#allocation5], 128, 128, 8
    $region21: #{tpu_custom_call.1} parent=1 // pred_fallthru
      _
    // Predicated region
    $region22: #{tpu_custom_call.1} parent=1 // pred_check
      _
    $region23: #{tpu_custom_call.1} parent=1 // pred_check_branch
      %37 = sbr.rel (0) target = $region25
    $region24: #{tpu_custom_call.1} parent=1 // pred_region
      _
    $region25: #{tpu_custom_call.1} parent=1 // pred_fallthru
      _
    // Predicated region
    $region26: #{tpu_custom_call.1} parent=1 // pred_check
      _
    $region27: #{tpu_custom_call.1} parent=1 // pred_check_branch
      %39 = sbr.rel (0) target = $region29
    $region28: #{tpu_custom_call.1} parent=1 // pred_region
      _
    $region29: #{tpu_custom_call.1} parent=1 // pred_fallthru
      _
    // Predicated region
    $region30: #{tpu_custom_call.1} parent=1 // pred_check
      _
    $region31: #{tpu_custom_call.1} parent=1 // pred_check_branch
      %41 = sbr.rel (0) target = $region33
    $region32: #{tpu_custom_call.1} parent=1 // pred_region
      _
    $region33: #{tpu_custom_call.1} parent=1 // pred_fallthru
      _
    // Predicated region
    $region34: #{tpu_custom_call.1} parent=1 // pred_check
      _
    $region35: #{tpu_custom_call.1} parent=1 // pred_check_branch
      %43 = sbr.rel (0) target = $region37
    $region36: #{tpu_custom_call.1} parent=1 // pred_region
      %44 = dma.done [#allocation5], 4096
    $region37: #{tpu_custom_call.1} parent=1 // pred_fallthru
      _
    %v45 = vld [vmem:[%s0] sm:$0xff]
    %v46 = vld [vmem:[%s0 + $0x8] sm:$0xff]
    %v47 = vld [vmem:[%s0 + $0x10] sm:$0xff]
    %v48 = vld [vmem:[%s0 + $0x18] sm:$0xff]
    %v49 = vld [vmem:[%s0 + $0x20] sm:$0xff]
    %v50 = vld [vmem:[%s0 + $0x28] sm:$0xff]
    %v51 = vld [vmem:[%s0 + $0x30] sm:$0xff]
    %v52 = vld [vmem:[%s0 + $0x38] sm:$0xff]
    %v53 = vld [vmem:[%s1] sm:$0xff]
    %v54 = vld [vmem:[%s1 + $0x8] sm:$0xff]
    %v55 = vld [vmem:[%s1 + $0x10] sm:$0xff]
    %v56 = vld [vmem:[%s1 + $0x18] sm:$0xff]
    %v57 = vld [vmem:[%s3] sm:$0x1]
    %v59 = vlaneseq
    %v60 = vshrl.u32 %v59, 7
    %v61 = vsub.s32 0, %v60
    %v62 = vrot.slane %v57, %v61
    %vm64 = vcmask 261120
    %v66 = vsel %vm64, %v45, 0
    %v69 = vsel %vm64, %v46, 0
    %v72 = vsel %vm64, %v47, 0
    %v75 = vsel %vm64, %v48, 0
    %v78 = vsel %vm64, %v49, 0
    %v81 = vsel %vm64, %v50, 0
    %v84 = vsel %vm64, %v51, 0
    %v87 = vsel %vm64, %v52, 0
    %89 = vmatprep.subr.mxu0 0.0
    %90 = vmatpush1.msra.mxu0 0.0
    %91 = vmatprep.subr.mxu0 0.0
    %92 = vmatpush1.msra.mxu0 0.0
    %93 = vmatprep.subr.mxu0 0.0
    %94 = vmatpush1.msra.mxu0 0.0
    %95 = vmatprep.subr.mxu0 0.0
    %96 = vmatpush1.msra.mxu0 0.0
    %97 = vmatprep.subr.mxu0 0.0
    %98 = vmatpush1.msra.mxu0 0.0
    %99 = vmatprep.subr.mxu0 0.0
    %100 = vmatpush1.msra.mxu0 0.0
    %101 = vmatprep.subr.mxu0 0.0
    %102 = vmatpush1.msra.mxu0 0.0
    %103 = vmatprep.subr.mxu0 0.0
    %104 = vmatpush1.msra.mxu0 0.0
    %105 = vmatprep.subr.mxu0 0.0
    %106 = vmatpush1.msra.mxu0 0.0
    %107 = vmatprep.subr.mxu0 0.0
    %108 = vmatpush1.msra.mxu0 0.0
    %109 = vmatprep.subr.mxu0 0.0
    %110 = vmatpush1.msra.mxu0 0.0
    %111 = vmatprep.subr.mxu0 0.0
    %112 = vmatpush1.msra.mxu0 0.0
    %113 = vmatprep.subr.mxu0 0.0
    %114 = vmatpush1.msra.mxu0 %v56
    %115 = vmatprep.subr.mxu0 0.0
    %116 = vmatpush1.msra.mxu0 %v55
    %117 = vmatprep.subr.mxu0 0.0
    %118 = vmatpush1.msra.mxu0 %v54
    %119 = vmatprep.subr.mxu0 0.0
    %120 = vmatpush1.msra.mxu0 %v53
    %121 = vmatprep.subr.mxu0 0.0
    %122 = vmatpush2.msra.mxu0 0.0
    %123 = vmatprep.subr.mxu0 0.0
    %124 = vmatpush2.msra.mxu0 0.0
    %125 = vmatprep.subr.mxu0 0.0
    %126 = vmatpush2.msra.mxu0 0.0
    %127 = vmatprep.subr.mxu0 0.0
    %128 = vmatpush2.msra.mxu0 0.0
    %129 = vmatprep.subr.mxu0 0.0
    %130 = vmatpush2.msra.mxu0 0.0
    %131 = vmatprep.subr.mxu0 0.0
    %132 = vmatpush2.msra.mxu0 0.0
    %133 = vmatprep.subr.mxu0 0.0
    %134 = vmatpush2.msra.mxu0 0.0
    %135 = vmatprep.subr.mxu0 0.0
    %136 = vmatpush2.msra.mxu0 0.0
    %137 = vmatprep.subr.mxu0 0.0
    %138 = vmatpush2.msra.mxu0 0.0
    %139 = vmatprep.subr.mxu0 0.0
    %140 = vmatpush2.msra.mxu0 0.0
    %141 = vmatprep.subr.mxu0 0.0
    %142 = vmatpush2.msra.mxu0 0.0
    %143 = vmatprep.subr.mxu0 0.0
    %144 = vmatpush2.msra.mxu0 0.0
    %145 = vmatprep.subr.mxu0 0.0
    %146 = vmatpush2.msra.mxu0 0.0
    %147 = vmatprep.subr.mxu0 0.0
    %148 = vmatpush2.msra.mxu0 0.0
    %149 = vmatprep.subr.mxu0 0.0
    %150 = vmatpush2.msra.mxu0 0.0
    %151 = vmatprep.subr.mxu0 0.0
    %152 = vmatpush2.msra.mxu0 0.0
    %153 = vmatprep.mubr.f32.mxu0 0.0
    %154 = vmatmul.mubr.f32.gmra.mxu0 %v66
    %v155 = vpop.f32.mrf.mxu0
    %v156 = vadd.f32 %v62, %v155
    %v157 = vpop.f32.mrf.mxu0
    %158 = vmatprep.mubr.f32.mxu0 0.0
    %159 = vmatmul.mubr.f32.gmra.mxu0 %v69
    %v160 = vpop.f32.mrf.mxu0
    %v161 = vadd.f32 %v62, %v160
    %v162 = vpop.f32.mrf.mxu0
    %163 = vmatprep.mubr.f32.mxu0 0.0
    %164 = vmatmul.mubr.f32.gmra.mxu0 %v72
    %v165 = vpop.f32.mrf.mxu0
    %v166 = vadd.f32 %v62, %v165
    %v167 = vpop.f32.mrf.mxu0
    %168 = vmatprep.mubr.f32.mxu0 0.0
    %169 = vmatmul.mubr.f32.gmra.mxu0 %v75
    %v170 = vpop.f32.mrf.mxu0
    %v171 = vadd.f32 %v62, %v170
    %v172 = vpop.f32.mrf.mxu0
    %173 = vmatprep.mubr.f32.mxu0 0.0
    %174 = vmatmul.mubr.f32.gmra.mxu0 %v78
    %v175 = vpop.f32.mrf.mxu0
    %v176 = vadd.f32 %v62, %v175
    %v177 = vpop.f32.mrf.mxu0
    %178 = vmatprep.mubr.f32.mxu0 0.0
    %179 = vmatmul.mubr.f32.gmra.mxu0 %v81
    %v180 = vpop.f32.mrf.mxu0
    %v181 = vadd.f32 %v62, %v180
    %v182 = vpop.f32.mrf.mxu0
    %183 = vmatprep.mubr.f32.mxu0 0.0
    %184 = vmatmul.mubr.f32.gmra.mxu0 %v84
    %v185 = vpop.f32.mrf.mxu0
    %v186 = vadd.f32 %v62, %v185
    %v187 = vpop.f32.mrf.mxu0
    %188 = vmatprep.mubr.f32.mxu0 0.0
    %189 = vmatmul.mubr.f32.gmra.mxu0 %v87
    %v190 = vpop.f32.mrf.mxu0
    %v191 = vadd.f32 %v62, %v190
    %v192 = vpop.f32.mrf.mxu0
    %193 = vdwg.mxu0
    %194 = vst [vmem:[#allocation2] sm:$0xff] %v156
    %195 = vst [vmem:[#allocation2 + $0x8] sm:$0xff] %v161
    %196 = vst [vmem:[#allocation2 + $0x10] sm:$0xff] %v166
    %197 = vst [vmem:[#allocation2 + $0x18] sm:$0xff] %v171
    %198 = vst [vmem:[#allocation2 + $0x20] sm:$0xff] %v176
    %199 = vst [vmem:[#allocation2 + $0x28] sm:$0xff] %v181
    %200 = vst [vmem:[#allocation2 + $0x30] sm:$0xff] %v186
    %201 = vst [vmem:[#allocation2 + $0x38] sm:$0xff] %v191
    %v202 = vld [vmem:[%s2] sm:$0xff]
    %v203 = vld [vmem:[%s2 + $0x8] sm:$0xff]
    %v204 = vld [vmem:[%s2 + $0x10] sm:$0xff]
    %v205 = vld [vmem:[%s2 + $0x18] sm:$0xff]
    %v206 = vld [vmem:[%s2 + $0x20] sm:$0xff]
    %v207 = vld [vmem:[%s2 + $0x28] sm:$0xff]
    %v208 = vld [vmem:[%s2 + $0x30] sm:$0xff]
    %v209 = vld [vmem:[%s2 + $0x38] sm:$0xff]
    %v210 = vld [vmem:[%s2 + $0x40] sm:$0xff]
    %v211 = vld [vmem:[%s2 + $0x48] sm:$0xff]
    %v212 = vld [vmem:[%s2 + $0x50] sm:$0xff]
    %v213 = vld [vmem:[%s2 + $0x58] sm:$0xff]
    %v214 = vld [vmem:[%s2 + $0x60] sm:$0xff]
    %v215 = vld [vmem:[%s2 + $0x68] sm:$0xff]
    %v216 = vld [vmem:[%s2 + $0x70] sm:$0xff]
    %v217 = vld [vmem:[%s2 + $0x78] sm:$0xff]
    %v218 = vld [vmem:[#allocation4] sm:$0xff]
    %v219 = vld [vmem:[#allocation4 + $0x8] sm:$0xff]
    %v220 = vld [vmem:[#allocation4 + $0x10] sm:$0xff]
    %v221 = vld [vmem:[#allocation4 + $0x18] sm:$0xff]
    %v222 = vld [vmem:[#allocation4 + $0x20] sm:$0xff]
    %v223 = vld [vmem:[#allocation4 + $0x28] sm:$0xff]
    %v224 = vld [vmem:[#allocation4 + $0x30] sm:$0xff]
    %v225 = vld [vmem:[#allocation4 + $0x38] sm:$0xff]
    %v226 = vld [vmem:[#allocation4 + $0x40] sm:$0xff]
    %v227 = vld [vmem:[#allocation4 + $0x48] sm:$0xff]
    %v228 = vld [vmem:[#allocation4 + $0x50] sm:$0xff]
    %v229 = vld [vmem:[#allocation4 + $0x58] sm:$0xff]
    %v230 = vld [vmem:[#allocation4 + $0x60] sm:$0xff]
    %v231 = vld [vmem:[#allocation4 + $0x68] sm:$0xff]
    %v232 = vld [vmem:[#allocation4 + $0x70] sm:$0xff]
    %v233 = vld [vmem:[#allocation4 + $0x78] sm:$0xff]
    %v234 = vld [vmem:[#allocation4 + $0x80] sm:$0xff]
    %v235 = vld [vmem:[#allocation4 + $0x88] sm:$0xff]
    %v236 = vld [vmem:[#allocation4 + $0x90] sm:$0xff]
    %v237 = vld [vmem:[#allocation4 + $0x98] sm:$0xff]
    %v238 = vld [vmem:[#allocation4 + $0xa0] sm:$0xff]
    %v239 = vld [vmem:[#allocation4 + $0xa8] sm:$0xff]
    %v240 = vld [vmem:[#allocation4 + $0xb0] sm:$0xff]
    %v241 = vld [vmem:[#allocation4 + $0xb8] sm:$0xff]
    %v242 = vld [vmem:[#allocation4 + $0xc0] sm:$0xff]
    %v243 = vld [vmem:[#allocation4 + $0xc8] sm:$0xff]
    %v244 = vld [vmem:[#allocation4 + $0xd0] sm:$0xff]
    %v245 = vld [vmem:[#allocation4 + $0xd8] sm:$0xff]
    %v246 = vld [vmem:[#allocation4 + $0xe0] sm:$0xff]
    %v247 = vld [vmem:[#allocation4 + $0xe8] sm:$0xff]
    %v248 = vld [vmem:[#allocation4 + $0xf0] sm:$0xff]
    %v249 = vld [vmem:[#allocation4 + $0xf8] sm:$0xff]
    %v250 = vld [vmem:[%s5] sm:$0x1]
    %v252 = vlaneseq
    %v253 = vshrl.u32 %v252, 7
    %v254 = vsub.s32 0, %v253
    %v255 = vrot.slane %v250, %v254
    %v257 = vld [vmem:[#allocation2] sm:$0xff]
    %258 = vmatprep.subr.mxu0 0.0
    %259 = vmatpush1.msra.mxu0 %v217
    %260 = vmatprep.subr.mxu0 0.0
    %261 = vmatpush1.msra.mxu0 %v216
    %262 = vmatprep.subr.mxu0 0.0
    %263 = vmatpush1.msra.mxu0 %v215
    %264 = vmatprep.subr.mxu0 0.0
    %265 = vmatpush1.msra.mxu0 %v214
    %266 = vmatprep.subr.mxu0 0.0
    %267 = vmatpush1.msra.mxu0 %v213
    %268 = vmatprep.subr.mxu0 0.0
    %269 = vmatpush1.msra.mxu0 %v212
    %270 = vmatprep.subr.mxu0 0.0
    %271 = vmatpush1.msra.mxu0 %v211
    %272 = vmatprep.subr.mxu0 0.0
    %273 = vmatpush1.msra.mxu0 %v210
    %274 = vmatprep.subr.mxu0 0.0
    %275 = vmatpush1.msra.mxu0 %v209
    %276 = vmatprep.subr.mxu0 0.0
    %277 = vmatpush1.msra.mxu0 %v208
    %278 = vmatprep.subr.mxu0 0.0
    %279 = vmatpush1.msra.mxu0 %v207
    %280 = vmatprep.subr.mxu0 0.0
    %281 = vmatpush1.msra.mxu0 %v206
    %282 = vmatprep.subr.mxu0 0.0
    %283 = vmatpush1.msra.mxu0 %v205
    %284 = vmatprep.subr.mxu0 0.0
    %285 = vmatpush1.msra.mxu0 %v204
    %286 = vmatprep.subr.mxu0 0.0
    %287 = vmatpush1.msra.mxu0 %v203
    %288 = vmatprep.subr.mxu0 0.0
    %289 = vmatpush1.msra.mxu0 %v202
    %290 = vmatprep.subr.mxu0 0.0
    %291 = vmatpush2.msra.mxu0 0.0
    %292 = vmatprep.subr.mxu0 0.0
    %293 = vmatpush2.msra.mxu0 0.0
    %294 = vmatprep.subr.mxu0 0.0
    %295 = vmatpush2.msra.mxu0 0.0
    %296 = vmatprep.subr.mxu0 0.0
    %297 = vmatpush2.msra.mxu0 0.0
    %298 = vmatprep.subr.mxu0 0.0
    %299 = vmatpush2.msra.mxu0 0.0
    %300 = vmatprep.subr.mxu0 0.0
    %301 = vmatpush2.msra.mxu0 0.0
    %302 = vmatprep.subr.mxu0 0.0
    %303 = vmatpush2.msra.mxu0 0.0
    %304 = vmatprep.subr.mxu0 0.0
    %305 = vmatpush2.msra.mxu0 0.0
    %306 = vmatprep.subr.mxu0 0.0
    %307 = vmatpush2.msra.mxu0 0.0
    %308 = vmatprep.subr.mxu0 0.0
    %309 = vmatpush2.msra.mxu0 0.0
    %310 = vmatprep.subr.mxu0 0.0
    %311 = vmatpush2.msra.mxu0 0.0
    %312 = vmatprep.subr.mxu0 0.0
    %313 = vmatpush2.msra.mxu0 0.0
    %314 = vmatprep.subr.mxu0 0.0
    %315 = vmatpush2.msra.mxu0 0.0
    %316 = vmatprep.subr.mxu0 0.0
    %317 = vmatpush2.msra.mxu0 0.0
    %318 = vmatprep.subr.mxu0 0.0
    %319 = vmatpush2.msra.mxu0 0.0
    %320 = vmatprep.subr.mxu0 0.0
    %321 = vmatpush2.msra.mxu0 0.0
    %322 = vmatprep.mubr.f32.mxu0 0.0
    %323 = vmatmul.mubr.f32.gmra.mxu0 0.0
    %v324 = vpop.f32.mrf.mxu0
    %v325 = vadd.f32 0.0, %v324
    %v326 = vpop.f32.mrf.mxu0
    %327 = vdwg.mxu0
    %v328 = vadd.f32 %v257, %v325
    %v329 = vtanh.pop %v328
    %330 = vmatprep.subr.mxu0 0.0
    %331 = vmatpush1.msra.mxu0 %v233
    %332 = vmatprep.subr.mxu0 0.0
    %333 = vmatpush1.msra.mxu0 %v232
    %334 = vmatprep.subr.mxu0 0.0
    %335 = vmatpush1.msra.mxu0 %v231
    %336 = vmatprep.subr.mxu0 0.0
    %337 = vmatpush1.msra.mxu0 %v230
    %338 = vmatprep.subr.mxu0 0.0
    %339 = vmatpush1.msra.mxu0 %v229
    %340 = vmatprep.subr.mxu0 0.0
    %341 = vmatpush1.msra.mxu0 %v228
    %342 = vmatprep.subr.mxu0 0.0
    %343 = vmatpush1.msra.mxu0 %v227
    %344 = vmatprep.subr.mxu0 0.0
    %345 = vmatpush1.msra.mxu0 %v226
    %346 = vmatprep.subr.mxu0 0.0
    %347 = vmatpush1.msra.mxu0 %v225
    %348 = vmatprep.subr.mxu0 0.0
    %349 = vmatpush1.msra.mxu0 %v224
    %350 = vmatprep.subr.mxu0 0.0
    %351 = vmatpush1.msra.mxu0 %v223
    %352 = vmatprep.subr.mxu0 0.0
    %353 = vmatpush1.msra.mxu0 %v222
    %354 = vmatprep.subr.mxu0 0.0
    %355 = vmatpush1.msra.mxu0 %v221
    %356 = vmatprep.subr.mxu0 0.0
    %357 = vmatpush1.msra.mxu0 %v220
    %358 = vmatprep.subr.mxu0 0.0
    %359 = vmatpush1.msra.mxu0 %v219
    %360 = vmatprep.subr.mxu0 0.0
    %361 = vmatpush1.msra.mxu0 %v218
    %362 = vmatprep.subr.mxu0 0.0
    %363 = vmatpush2.msra.mxu0 %v249
    %364 = vmatprep.subr.mxu0 0.0
    %365 = vmatpush2.msra.mxu0 %v248
    %366 = vmatprep.subr.mxu0 0.0
    %367 = vmatpush2.msra.mxu0 %v247
    %368 = vmatprep.subr.mxu0 0.0
    %369 = vmatpush2.msra.mxu0 %v246
    %370 = vmatprep.subr.mxu0 0.0
    %371 = vmatpush2.msra.mxu0 %v245
    %372 = vmatprep.subr.mxu0 0.0
    %373 = vmatpush2.msra.mxu0 %v244
    %374 = vmatprep.subr.mxu0 0.0
    %375 = vmatpush2.msra.mxu0 %v243
    %376 = vmatprep.subr.mxu0 0.0
    %377 = vmatpush2.msra.mxu0 %v242
    %378 = vmatprep.subr.mxu0 0.0
    %379 = vmatpush2.msra.mxu0 %v241
    %380 = vmatprep.subr.mxu0 0.0
    %381 = vmatpush2.msra.mxu0 %v240
    %382 = vmatprep.subr.mxu0 0.0
    %383 = vmatpush2.msra.mxu0 %v239
    %384 = vmatprep.subr.mxu0 0.0
    %385 = vmatpush2.msra.mxu0 %v238
    %386 = vmatprep.subr.mxu0 0.0
    %387 = vmatpush2.msra.mxu0 %v237
    %388 = vmatprep.subr.mxu0 0.0
    %389 = vmatpush2.msra.mxu0 %v236
    %390 = vmatprep.subr.mxu0 0.0
    %391 = vmatpush2.msra.mxu0 %v235
    %392 = vmatprep.subr.mxu0 0.0
    %393 = vmatpush2.msra.mxu0 %v234
    %394 = vmatprep.mubr.f32.mxu0 0.0
    %395 = vmatmul.mubr.f32.gmra.mxu0 %v329
    %v396 = vpop.f32.mrf.mxu0
    %v397 = vadd.f32 %v255, %v396
    %v398 = vpop.f32.mrf.mxu0
    %399 = vdwg.mxu0
    %v400 = vtanh.pop %v397
    %s401 = scalar_lea.vmem [#allocation2], 8
    %v402 = vld [vmem:[%s401] sm:$0xff]
    %403 = vmatprep.subr.mxu0 0.0
    %404 = vmatpush1.msra.mxu0 %v217
    %405 = vmatprep.subr.mxu0 0.0
    %406 = vmatpush1.msra.mxu0 %v216
    %407 = vmatprep.subr.mxu0 0.0
    %408 = vmatpush1.msra.mxu0 %v215
    %409 = vmatprep.subr.mxu0 0.0
    %410 = vmatpush1.msra.mxu0 %v214
    %411 = vmatprep.subr.mxu0 0.0
    %412 = vmatpush1.msra.mxu0 %v213
    %413 = vmatprep.subr.mxu0 0.0
    %414 = vmatpush1.msra.mxu0 %v212
    %415 = vmatprep.subr.mxu0 0.0
    %416 = vmatpush1.msra.mxu0 %v211
    %417 = vmatprep.subr.mxu0 0.0
    %418 = vmatpush1.msra.mxu0 %v210
    %419 = vmatprep.subr.mxu0 0.0
    %420 = vmatpush1.msra.mxu0 %v209
    %421 = vmatprep.subr.mxu0 0.0
    %422 = vmatpush1.msra.mxu0 %v208
    %423 = vmatprep.subr.mxu0 0.0
    %424 = vmatpush1.msra.mxu0 %v207
    %425 = vmatprep.subr.mxu0 0.0
    %426 = vmatpush1.msra.mxu0 %v206
    %427 = vmatprep.subr.mxu0 0.0
    %428 = vmatpush1.msra.mxu0 %v205
    %429 = vmatprep.subr.mxu0 0.0
    %430 = vmatpush1.msra.mxu0 %v204
    %431 = vmatprep.subr.mxu0 0.0
    %432 = vmatpush1.msra.mxu0 %v203
    %433 = vmatprep.subr.mxu0 0.0
    %434 = vmatpush1.msra.mxu0 %v202
    %435 = vmatprep.subr.mxu0 0.0
    %436 = vmatpush2.msra.mxu0 0.0
    %437 = vmatprep.subr.mxu0 0.0
    %438 = vmatpush2.msra.mxu0 0.0
    %439 = vmatprep.subr.mxu0 0.0
    %440 = vmatpush2.msra.mxu0 0.0
    %441 = vmatprep.subr.mxu0 0.0
    %442 = vmatpush2.msra.mxu0 0.0
    %443 = vmatprep.subr.mxu0 0.0
    %444 = vmatpush2.msra.mxu0 0.0
    %445 = vmatprep.subr.mxu0 0.0
    %446 = vmatpush2.msra.mxu0 0.0
    %447 = vmatprep.subr.mxu0 0.0
    %448 = vmatpush2.msra.mxu0 0.0
    %449 = vmatprep.subr.mxu0 0.0
    %450 = vmatpush2.msra.mxu0 0.0
    %451 = vmatprep.subr.mxu0 0.0
    %452 = vmatpush2.msra.mxu0 0.0
    %453 = vmatprep.subr.mxu0 0.0
    %454 = vmatpush2.msra.mxu0 0.0
    %455 = vmatprep.subr.mxu0 0.0
    %456 = vmatpush2.msra.mxu0 0.0
    %457 = vmatprep.subr.mxu0 0.0
    %458 = vmatpush2.msra.mxu0 0.0
    %459 = vmatprep.subr.mxu0 0.0
    %460 = vmatpush2.msra.mxu0 0.0
    %461 = vmatprep.subr.mxu0 0.0
    %462 = vmatpush2.msra.mxu0 0.0
    %463 = vmatprep.subr.mxu0 0.0
    %464 = vmatpush2.msra.mxu0 0.0
    %465 = vmatprep.subr.mxu0 0.0
    %466 = vmatpush2.msra.mxu0 0.0
    %467 = vmatprep.mubr.f32.mxu0 0.0
    %468 = vmatmul.mubr.f32.gmra.mxu0 %v329
    %v469 = vpop.f32.mrf.mxu0
    %v470 = vadd.f32 0.0, %v469
    %v471 = vpop.f32.mrf.mxu0
    %472 = vdwg.mxu0
    %v473 = vadd.f32 %v402, %v470
    %v474 = vtanh.pop %v473
    %475 = vmatprep.subr.mxu0 0.0
    %476 = vmatpush1.msra.mxu0 %v233
    %477 = vmatprep.subr.mxu0 0.0
    %478 = vmatpush1.msra.mxu0 %v232
    %479 = vmatprep.subr.mxu0 0.0
    %480 = vmatpush1.msra.mxu0 %v231
    %481 = vmatprep.subr.mxu0 0.0
    %482 = vmatpush1.msra.mxu0 %v230
    %483 = vmatprep.subr.mxu0 0.0
    %484 = vmatpush1.msra.mxu0 %v229
    %485 = vmatprep.subr.mxu0 0.0
    %486 = vmatpush1.msra.mxu0 %v228
    %487 = vmatprep.subr.mxu0 0.0
    %488 = vmatpush1.msra.mxu0 %v227
    %489 = vmatprep.subr.mxu0 0.0
    %490 = vmatpush1.msra.mxu0 %v226
    %491 = vmatprep.subr.mxu0 0.0
    %492 = vmatpush1.msra.mxu0 %v225
    %493 = vmatprep.subr.mxu0 0.0
    %494 = vmatpush1.msra.mxu0 %v224
    %495 = vmatprep.subr.mxu0 0.0
    %496 = vmatpush1.msra.mxu0 %v223
    %497 = vmatprep.subr.mxu0 0.0
    %498 = vmatpush1.msra.mxu0 %v222
    %499 = vmatprep.subr.mxu0 0.0
    %500 = vmatpush1.msra.mxu0 %v221
    %501 = vmatprep.subr.mxu0 0.0
    %502 = vmatpush1.msra.mxu0 %v220
    %503 = vmatprep.subr.mxu0 0.0
    %504 = vmatpush1.msra.mxu0 %v219
    %505 = vmatprep.subr.mxu0 0.0
    %506 = vmatpush1.msra.mxu0 %v218
    %507 = vmatprep.subr.mxu0 0.0
    %508 = vmatpush2.msra.mxu0 %v249
    %509 = vmatprep.subr.mxu0 0.0
    %510 = vmatpush2.msra.mxu0 %v248
    %511 = vmatprep.subr.mxu0 0.0
    %512 = vmatpush2.msra.mxu0 %v247
    %513 = vmatprep.subr.mxu0 0.0
    %514 = vmatpush2.msra.mxu0 %v246
    %515 = vmatprep.subr.mxu0 0.0
    %516 = vmatpush2.msra.mxu0 %v245
    %517 = vmatprep.subr.mxu0 0.0
    %518 = vmatpush2.msra.mxu0 %v244
    %519 = vmatprep.subr.mxu0 0.0
    %520 = vmatpush2.msra.mxu0 %v243
    %521 = vmatprep.subr.mxu0 0.0
    %522 = vmatpush2.msra.mxu0 %v242
    %523 = vmatprep.subr.mxu0 0.0
    %524 = vmatpush2.msra.mxu0 %v241
    %525 = vmatprep.subr.mxu0 0.0
    %526 = vmatpush2.msra.mxu0 %v240
    %527 = vmatprep.subr.mxu0 0.0
    %528 = vmatpush2.msra.mxu0 %v239
    %529 = vmatprep.subr.mxu0 0.0
    %530 = vmatpush2.msra.mxu0 %v238
    %531 = vmatprep.subr.mxu0 0.0
    %532 = vmatpush2.msra.mxu0 %v237
    %533 = vmatprep.subr.mxu0 0.0
    %534 = vmatpush2.msra.mxu0 %v236
    %535 = vmatprep.subr.mxu0 0.0
    %536 = vmatpush2.msra.mxu0 %v235
    %537 = vmatprep.subr.mxu0 0.0
    %538 = vmatpush2.msra.mxu0 %v234
    %539 = vmatprep.mubr.f32.mxu0 %v400
    %540 = vmatmul.mubr.f32.gmra.mxu0 %v474
    %v541 = vpop.f32.mrf.mxu0
    %v542 = vadd.f32 %v255, %v541
    %v543 = vpop.f32.mrf.mxu0
    %544 = vdwg.mxu0
    %v545 = vtanh.pop %v542
    %s546 = scalar_lea.vmem [#allocation2], 16
    %v547 = vld [vmem:[%s546] sm:$0xff]
    %548 = vmatprep.subr.mxu0 0.0
    %549 = vmatpush1.msra.mxu0 %v217
    %550 = vmatprep.subr.mxu0 0.0
    %551 = vmatpush1.msra.mxu0 %v216
    %552 = vmatprep.subr.mxu0 0.0
    %553 = vmatpush1.msra.mxu0 %v215
    %554 = vmatprep.subr.mxu0 0.0
    %555 = vmatpush1.msra.mxu0 %v214
    %556 = vmatprep.subr.mxu0 0.0
    %557 = vmatpush1.msra.mxu0 %v213
    %558 = vmatprep.subr.mxu0 0.0
    %559 = vmatpush1.msra.mxu0 %v212
    %560 = vmatprep.subr.mxu0 0.0
    %561 = vmatpush1.msra.mxu0 %v211
    %562 = vmatprep.subr.mxu0 0.0
    %563 = vmatpush1.msra.mxu0 %v210
    %564 = vmatprep.subr.mxu0 0.0
    %565 = vmatpush1.msra.mxu0 %v209
    %566 = vmatprep.subr.mxu0 0.0
    %567 = vmatpush1.msra.mxu0 %v208
    %568 = vmatprep.subr.mxu0 0.0
    %569 = vmatpush1.msra.mxu0 %v207
    %570 = vmatprep.subr.mxu0 0.0
    %571 = vmatpush1.msra.mxu0 %v206
    %572 = vmatprep.subr.mxu0 0.0
    %573 = vmatpush1.msra.mxu0 %v205
    %574 = vmatprep.subr.mxu0 0.0
    %575 = vmatpush1.msra.mxu0 %v204
    %576 = vmatprep.subr.mxu0 0.0
    %577 = vmatpush1.msra.mxu0 %v203
    %578 = vmatprep.subr.mxu0 0.0
    %579 = vmatpush1.msra.mxu0 %v202
    %580 = vmatprep.subr.mxu0 0.0
    %581 = vmatpush2.msra.mxu0 0.0
    %582 = vmatprep.subr.mxu0 0.0
    %583 = vmatpush2.msra.mxu0 0.0
    %584 = vmatprep.subr.mxu0 0.0
    %585 = vmatpush2.msra.mxu0 0.0
    %586 = vmatprep.subr.mxu0 0.0
    %587 = vmatpush2.msra.mxu0 0.0
    %588 = vmatprep.subr.mxu0 0.0
    %589 = vmatpush2.msra.mxu0 0.0
    %590 = vmatprep.subr.mxu0 0.0
    %591 = vmatpush2.msra.mxu0 0.0
    %592 = vmatprep.subr.mxu0 0.0
    %593 = vmatpush2.msra.mxu0 0.0
    %594 = vmatprep.subr.mxu0 0.0
    %595 = vmatpush2.msra.mxu0 0.0
    %596 = vmatprep.subr.mxu0 0.0
    %597 = vmatpush2.msra.mxu0 0.0
    %598 = vmatprep.subr.mxu0 0.0
    %599 = vmatpush2.msra.mxu0 0.0
    %600 = vmatprep.subr.mxu0 0.0
    %601 = vmatpush2.msra.mxu0 0.0
    %602 = vmatprep.subr.mxu0 0.0
    %603 = vmatpush2.msra.mxu0 0.0
    %604 = vmatprep.subr.mxu0 0.0
    %605 = vmatpush2.msra.mxu0 0.0
    %606 = vmatprep.subr.mxu0 0.0
    %607 = vmatpush2.msra.mxu0 0.0
    %608 = vmatprep.subr.mxu0 0.0
    %609 = vmatpush2.msra.mxu0 0.0
    %610 = vmatprep.subr.mxu0 0.0
    %611 = vmatpush2.msra.mxu0 0.0
    %612 = vmatprep.mubr.f32.mxu0 0.0
    %613 = vmatmul.mubr.f32.gmra.mxu0 %v474
    %v614 = vpop.f32.mrf.mxu0
    %v615 = vadd.f32 0.0, %v614
    %v616 = vpop.f32.mrf.mxu0
    %617 = vdwg.mxu0
    %v618 = vadd.f32 %v547, %v615
    %v619 = vtanh.pop %v618
    %620 = vmatprep.subr.mxu0 0.0
    %621 = vmatpush1.msra.mxu0 %v233
    %622 = vmatprep.subr.mxu0 0.0
    %623 = vmatpush1.msra.mxu0 %v232
    %624 = vmatprep.subr.mxu0 0.0
    %625 = vmatpush1.msra.mxu0 %v231
    %626 = vmatprep.subr.mxu0 0.0
    %627 = vmatpush1.msra.mxu0 %v230
    %628 = vmatprep.subr.mxu0 0.0
    %629 = vmatpush1.msra.mxu0 %v229
    %630 = vmatprep.subr.mxu0 0.0
    %631 = vmatpush1.msra.mxu0 %v228
    %632 = vmatprep.subr.mxu0 0.0
    %633 = vmatpush1.msra.mxu0 %v227
    %634 = vmatprep.subr.mxu0 0.0
    %635 = vmatpush1.msra.mxu0 %v226
    %636 = vmatprep.subr.mxu0 0.0
    %637 = vmatpush1.msra.mxu0 %v225
    %638 = vmatprep.subr.mxu0 0.0
    %639 = vmatpush1.msra.mxu0 %v224
    %640 = vmatprep.subr.mxu0 0.0
    %641 = vmatpush1.msra.mxu0 %v223
    %642 = vmatprep.subr.mxu0 0.0
    %643 = vmatpush1.msra.mxu0 %v222
    %644 = vmatprep.subr.mxu0 0.0
    %645 = vmatpush1.msra.mxu0 %v221
    %646 = vmatprep.subr.mxu0 0.0
    %647 = vmatpush1.msra.mxu0 %v220
    %648 = vmatprep.subr.mxu0 0.0
    %649 = vmatpush1.msra.mxu0 %v219
    %650 = vmatprep.subr.mxu0 0.0
    %651 = vmatpush1.msra.mxu0 %v218
    %652 = vmatprep.subr.mxu0 0.0
    %653 = vmatpush2.msra.mxu0 %v249
    %654 = vmatprep.subr.mxu0 0.0
    %655 = vmatpush2.msra.mxu0 %v248
    %656 = vmatprep.subr.mxu0 0.0
    %657 = vmatpush2.msra.mxu0 %v247
    %658 = vmatprep.subr.mxu0 0.0
    %659 = vmatpush2.msra.mxu0 %v246
    %660 = vmatprep.subr.mxu0 0.0
    %661 = vmatpush2.msra.mxu0 %v245
    %662 = vmatprep.subr.mxu0 0.0
    %663 = vmatpush2.msra.mxu0 %v244
    %664 = vmatprep.subr.mxu0 0.0
    %665 = vmatpush2.msra.mxu0 %v243
    %666 = vmatprep.subr.mxu0 0.0
    %667 = vmatpush2.msra.mxu0 %v242
    %668 = vmatprep.subr.mxu0 0.0
    %669 = vmatpush2.msra.mxu0 %v241
    %670 = vmatprep.subr.mxu0 0.0
    %671 = vmatpush2.msra.mxu0 %v240
    %672 = vmatprep.subr.mxu0 0.0
    %673 = vmatpush2.msra.mxu0 %v239
    %674 = vmatprep.subr.mxu0 0.0
    %675 = vmatpush2.msra.mxu0 %v238
    %676 = vmatprep.subr.mxu0 0.0
    %677 = vmatpush2.msra.mxu0 %v237
    %678 = vmatprep.subr.mxu0 0.0
    %679 = vmatpush2.msra.mxu0 %v236
    %680 = vmatprep.subr.mxu0 0.0
    %681 = vmatpush2.msra.mxu0 %v235
    %682 = vmatprep.subr.mxu0 0.0
    %683 = vmatpush2.msra.mxu0 %v234
    %684 = vmatprep.mubr.f32.mxu0 %v545
    %685 = vmatmul.mubr.f32.gmra.mxu0 %v619
    %v686 = vpop.f32.mrf.mxu0
    %v687 = vadd.f32 %v255, %v686
    %v688 = vpop.f32.mrf.mxu0
    %689 = vdwg.mxu0
    %v690 = vtanh.pop %v687
    %s691 = scalar_lea.vmem [#allocation2], 24
    %v692 = vld [vmem:[%s691] sm:$0xff]
    %693 = vmatprep.subr.mxu0 0.0
    %694 = vmatpush1.msra.mxu0 %v217
    %695 = vmatprep.subr.mxu0 0.0
    %696 = vmatpush1.msra.mxu0 %v216
    %697 = vmatprep.subr.mxu0 0.0
    %698 = vmatpush1.msra.mxu0 %v215
    %699 = vmatprep.subr.mxu0 0.0
    %700 = vmatpush1.msra.mxu0 %v214
    %701 = vmatprep.subr.mxu0 0.0
    %702 = vmatpush1.msra.mxu0 %v213
    %703 = vmatprep.subr.mxu0 0.0
    %704 = vmatpush1.msra.mxu0 %v212
    %705 = vmatprep.subr.mxu0 0.0
    %706 = vmatpush1.msra.mxu0 %v211
    %707 = vmatprep.subr.mxu0 0.0
    %708 = vmatpush1.msra.mxu0 %v210
    %709 = vmatprep.subr.mxu0 0.0
    %710 = vmatpush1.msra.mxu0 %v209
    %711 = vmatprep.subr.mxu0 0.0
    %712 = vmatpush1.msra.mxu0 %v208
    %713 = vmatprep.subr.mxu0 0.0
    %714 = vmatpush1.msra.mxu0 %v207
    %715 = vmatprep.subr.mxu0 0.0
    %716 = vmatpush1.msra.mxu0 %v206
    %717 = vmatprep.subr.mxu0 0.0
    %718 = vmatpush1.msra.mxu0 %v205
    %719 = vmatprep.subr.mxu0 0.0
    %720 = vmatpush1.msra.mxu0 %v204
    %721 = vmatprep.subr.mxu0 0.0
    %722 = vmatpush1.msra.mxu0 %v203
    %723 = vmatprep.subr.mxu0 0.0
    %724 = vmatpush1.msra.mxu0 %v202
    %725 = vmatprep.subr.mxu0 0.0
    %726 = vmatpush2.msra.mxu0 0.0
    %727 = vmatprep.subr.mxu0 0.0
    %728 = vmatpush2.msra.mxu0 0.0
    %729 = vmatprep.subr.mxu0 0.0
    %730 = vmatpush2.msra.mxu0 0.0
    %731 = vmatprep.subr.mxu0 0.0
    %732 = vmatpush2.msra.mxu0 0.0
    %733 = vmatprep.subr.mxu0 0.0
    %734 = vmatpush2.msra.mxu0 0.0
    %735 = vmatprep.subr.mxu0 0.0
    %736 = vmatpush2.msra.mxu0 0.0
    %737 = vmatprep.subr.mxu0 0.0
    %738 = vmatpush2.msra.mxu0 0.0
    %739 = vmatprep.subr.mxu0 0.0
    %740 = vmatpush2.msra.mxu0 0.0
    %741 = vmatprep.subr.mxu0 0.0
    %742 = vmatpush2.msra.mxu0 0.0
    %743 = vmatprep.subr.mxu0 0.0
    %744 = vmatpush2.msra.mxu0 0.0
    %745 = vmatprep.subr.mxu0 0.0
    %746 = vmatpush2.msra.mxu0 0.0
    %747 = vmatprep.subr.mxu0 0.0
    %748 = vmatpush2.msra.mxu0 0.0
    %749 = vmatprep.subr.mxu0 0.0
    %750 = vmatpush2.msra.mxu0 0.0
    %751 = vmatprep.subr.mxu0 0.0
    %752 = vmatpush2.msra.mxu0 0.0
    %753 = vmatprep.subr.mxu0 0.0
    %754 = vmatpush2.msra.mxu0 0.0
    %755 = vmatprep.subr.mxu0 0.0
    %756 = vmatpush2.msra.mxu0 0.0
    %757 = vmatprep.mubr.f32.mxu0 0.0
    %758 = vmatmul.mubr.f32.gmra.mxu0 %v619
    %v759 = vpop.f32.mrf.mxu0
    %v760 = vadd.f32 0.0, %v759
    %v761 = vpop.f32.mrf.mxu0
    %762 = vdwg.mxu0
    %v763 = vadd.f32 %v692, %v760
    %v764 = vtanh.pop %v763
    %765 = vmatprep.subr.mxu0 0.0
    %766 = vmatpush1.msra.mxu0 %v233
    %767 = vmatprep.subr.mxu0 0.0
    %768 = vmatpush1.msra.mxu0 %v232
    %769 = vmatprep.subr.mxu0 0.0
    %770 = vmatpush1.msra.mxu0 %v231
    %771 = vmatprep.subr.mxu0 0.0
    %772 = vmatpush1.msra.mxu0 %v230
    %773 = vmatprep.subr.mxu0 0.0
    %774 = vmatpush1.msra.mxu0 %v229
    %775 = vmatprep.subr.mxu0 0.0
    %776 = vmatpush1.msra.mxu0 %v228
    %777 = vmatprep.subr.mxu0 0.0
    %778 = vmatpush1.msra.mxu0 %v227
    %779 = vmatprep.subr.mxu0 0.0
    %780 = vmatpush1.msra.mxu0 %v226
    %781 = vmatprep.subr.mxu0 0.0
    %782 = vmatpush1.msra.mxu0 %v225
    %783 = vmatprep.subr.mxu0 0.0
    %784 = vmatpush1.msra.mxu0 %v224
    %785 = vmatprep.subr.mxu0 0.0
    %786 = vmatpush1.msra.mxu0 %v223
    %787 = vmatprep.subr.mxu0 0.0
    %788 = vmatpush1.msra.mxu0 %v222
    %789 = vmatprep.subr.mxu0 0.0
    %790 = vmatpush1.msra.mxu0 %v221
    %791 = vmatprep.subr.mxu0 0.0
    %792 = vmatpush1.msra.mxu0 %v220
    %793 = vmatprep.subr.mxu0 0.0
    %794 = vmatpush1.msra.mxu0 %v219
    %795 = vmatprep.subr.mxu0 0.0
    %796 = vmatpush1.msra.mxu0 %v218
    %797 = vmatprep.subr.mxu0 0.0
    %798 = vmatpush2.msra.mxu0 %v249
    %799 = vmatprep.subr.mxu0 0.0
    %800 = vmatpush2.msra.mxu0 %v248
    %801 = vmatprep.subr.mxu0 0.0
    %802 = vmatpush2.msra.mxu0 %v247
    %803 = vmatprep.subr.mxu0 0.0
    %804 = vmatpush2.msra.mxu0 %v246
    %805 = vmatprep.subr.mxu0 0.0
    %806 = vmatpush2.msra.mxu0 %v245
    %807 = vmatprep.subr.mxu0 0.0
    %808 = vmatpush2.msra.mxu0 %v244
    %809 = vmatprep.subr.mxu0 0.0
    %810 = vmatpush2.msra.mxu0 %v243
    %811 = vmatprep.subr.mxu0 0.0
    %812 = vmatpush2.msra.mxu0 %v242
    %813 = vmatprep.subr.mxu0 0.0
    %814 = vmatpush2.msra.mxu0 %v241
    %815 = vmatprep.subr.mxu0 0.0
    %816 = vmatpush2.msra.mxu0 %v240
    %817 = vmatprep.subr.mxu0 0.0
    %818 = vmatpush2.msra.mxu0 %v239
    %819 = vmatprep.subr.mxu0 0.0
    %820 = vmatpush2.msra.mxu0 %v238
    %821 = vmatprep.subr.mxu0 0.0
    %822 = vmatpush2.msra.mxu0 %v237
    %823 = vmatprep.subr.mxu0 0.0
    %824 = vmatpush2.msra.mxu0 %v236
    %825 = vmatprep.subr.mxu0 0.0
    %826 = vmatpush2.msra.mxu0 %v235
    %827 = vmatprep.subr.mxu0 0.0
    %828 = vmatpush2.msra.mxu0 %v234
    %829 = vmatprep.mubr.f32.mxu0 %v690
    %830 = vmatmul.mubr.f32.gmra.mxu0 %v764
    %v831 = vpop.f32.mrf.mxu0
    %v832 = vadd.f32 %v255, %v831
    %v833 = vpop.f32.mrf.mxu0
    %834 = vdwg.mxu0
    %v835 = vtanh.pop %v832
    %s836 = scalar_lea.vmem [#allocation2], 32
    %v837 = vld [vmem:[%s836] sm:$0xff]
    %838 = vmatprep.subr.mxu0 0.0
    %839 = vmatpush1.msra.mxu0 %v217
    %840 = vmatprep.subr.mxu0 0.0
    %841 = vmatpush1.msra.mxu0 %v216
    %842 = vmatprep.subr.mxu0 0.0
    %843 = vmatpush1.msra.mxu0 %v215
    %844 = vmatprep.subr.mxu0 0.0
    %845 = vmatpush1.msra.mxu0 %v214
    %846 = vmatprep.subr.mxu0 0.0
    %847 = vmatpush1.msra.mxu0 %v213
    %848 = vmatprep.subr.mxu0 0.0
    %849 = vmatpush1.msra.mxu0 %v212
    %850 = vmatprep.subr.mxu0 0.0
    %851 = vmatpush1.msra.mxu0 %v211
    %852 = vmatprep.subr.mxu0 0.0
    %853 = vmatpush1.msra.mxu0 %v210
    %854 = vmatprep.subr.mxu0 0.0
    %855 = vmatpush1.msra.mxu0 %v209
    %856 = vmatprep.subr.mxu0 0.0
    %857 = vmatpush1.msra.mxu0 %v208
    %858 = vmatprep.subr.mxu0 0.0
    %859 = vmatpush1.msra.mxu0 %v207
    %860 = vmatprep.subr.mxu0 0.0
    %861 = vmatpush1.msra.mxu0 %v206
    %862 = vmatprep.subr.mxu0 0.0
    %863 = vmatpush1.msra.mxu0 %v205
    %864 = vmatprep.subr.mxu0 0.0
    %865 = vmatpush1.msra.mxu0 %v204
    %866 = vmatprep.subr.mxu0 0.0
    %867 = vmatpush1.msra.mxu0 %v203
    %868 = vmatprep.subr.mxu0 0.0
    %869 = vmatpush1.msra.mxu0 %v202
    %870 = vmatprep.subr.mxu0 0.0
    %871 = vmatpush2.msra.mxu0 0.0
    %872 = vmatprep.subr.mxu0 0.0
    %873 = vmatpush2.msra.mxu0 0.0
    %874 = vmatprep.subr.mxu0 0.0
    %875 = vmatpush2.msra.mxu0 0.0
    %876 = vmatprep.subr.mxu0 0.0
    %877 = vmatpush2.msra.mxu0 0.0
    %878 = vmatprep.subr.mxu0 0.0
    %879 = vmatpush2.msra.mxu0 0.0
    %880 = vmatprep.subr.mxu0 0.0
    %881 = vmatpush2.msra.mxu0 0.0
    %882 = vmatprep.subr.mxu0 0.0
    %883 = vmatpush2.msra.mxu0 0.0
    %884 = vmatprep.subr.mxu0 0.0
    %885 = vmatpush2.msra.mxu0 0.0
    %886 = vmatprep.subr.mxu0 0.0
    %887 = vmatpush2.msra.mxu0 0.0
    %888 = vmatprep.subr.mxu0 0.0
    %889 = vmatpush2.msra.mxu0 0.0
    %890 = vmatprep.subr.mxu0 0.0
    %891 = vmatpush2.msra.mxu0 0.0
    %892 = vmatprep.subr.mxu0 0.0
    %893 = vmatpush2.msra.mxu0 0.0
    %894 = vmatprep.subr.mxu0 0.0
    %895 = vmatpush2.msra.mxu0 0.0
    %896 = vmatprep.subr.mxu0 0.0
    %897 = vmatpush2.msra.mxu0 0.0
    %898 = vmatprep.subr.mxu0 0.0
    %899 = vmatpush2.msra.mxu0 0.0
    %900 = vmatprep.subr.mxu0 0.0
    %901 = vmatpush2.msra.mxu0 0.0
    %902 = vmatprep.mubr.f32.mxu0 0.0
    %903 = vmatmul.mubr.f32.gmra.mxu0 %v764
    %v904 = vpop.f32.mrf.mxu0
    %v905 = vadd.f32 0.0, %v904
    %v906 = vpop.f32.mrf.mxu0
    %907 = vdwg.mxu0
    %v908 = vadd.f32 %v837, %v905
    %v909 = vtanh.pop %v908
    %910 = vmatprep.subr.mxu0 0.0
    %911 = vmatpush1.msra.mxu0 %v233
    %912 = vmatprep.subr.mxu0 0.0
    %913 = vmatpush1.msra.mxu0 %v232
    %914 = vmatprep.subr.mxu0 0.0
    %915 = vmatpush1.msra.mxu0 %v231
    %916 = vmatprep.subr.mxu0 0.0
    %917 = vmatpush1.msra.mxu0 %v230
    %918 = vmatprep.subr.mxu0 0.0
    %919 = vmatpush1.msra.mxu0 %v229
    %920 = vmatprep.subr.mxu0 0.0
    %921 = vmatpush1.msra.mxu0 %v228
    %922 = vmatprep.subr.mxu0 0.0
    %923 = vmatpush1.msra.mxu0 %v227
    %924 = vmatprep.subr.mxu0 0.0
    %925 = vmatpush1.msra.mxu0 %v226
    %926 = vmatprep.subr.mxu0 0.0
    %927 = vmatpush1.msra.mxu0 %v225
    %928 = vmatprep.subr.mxu0 0.0
    %929 = vmatpush1.msra.mxu0 %v224
    %930 = vmatprep.subr.mxu0 0.0
    %931 = vmatpush1.msra.mxu0 %v223
    %932 = vmatprep.subr.mxu0 0.0
    %933 = vmatpush1.msra.mxu0 %v222
    %934 = vmatprep.subr.mxu0 0.0
    %935 = vmatpush1.msra.mxu0 %v221
    %936 = vmatprep.subr.mxu0 0.0
    %937 = vmatpush1.msra.mxu0 %v220
    %938 = vmatprep.subr.mxu0 0.0
    %939 = vmatpush1.msra.mxu0 %v219
    %940 = vmatprep.subr.mxu0 0.0
    %941 = vmatpush1.msra.mxu0 %v218
    %942 = vmatprep.subr.mxu0 0.0
    %943 = vmatpush2.msra.mxu0 %v249
    %944 = vmatprep.subr.mxu0 0.0
    %945 = vmatpush2.msra.mxu0 %v248
    %946 = vmatprep.subr.mxu0 0.0
    %947 = vmatpush2.msra.mxu0 %v247
    %948 = vmatprep.subr.mxu0 0.0
    %949 = vmatpush2.msra.mxu0 %v246
    %950 = vmatprep.subr.mxu0 0.0
    %951 = vmatpush2.msra.mxu0 %v245
    %952 = vmatprep.subr.mxu0 0.0
    %953 = vmatpush2.msra.mxu0 %v244
    %954 = vmatprep.subr.mxu0 0.0
    %955 = vmatpush2.msra.mxu0 %v243
    %956 = vmatprep.subr.mxu0 0.0
    %957 = vmatpush2.msra.mxu0 %v242
    %958 = vmatprep.subr.mxu0 0.0
    %959 = vmatpush2.msra.mxu0 %v241
    %960 = vmatprep.subr.mxu0 0.0
    %961 = vmatpush2.msra.mxu0 %v240
    %962 = vmatprep.subr.mxu0 0.0
    %963 = vmatpush2.msra.mxu0 %v239
    %964 = vmatprep.subr.mxu0 0.0
    %965 = vmatpush2.msra.mxu0 %v238
    %966 = vmatprep.subr.mxu0 0.0
    %967 = vmatpush2.msra.mxu0 %v237
    %968 = vmatprep.subr.mxu0 0.0
    %969 = vmatpush2.msra.mxu0 %v236
    %970 = vmatprep.subr.mxu0 0.0
    %971 = vmatpush2.msra.mxu0 %v235
    %972 = vmatprep.subr.mxu0 0.0
    %973 = vmatpush2.msra.mxu0 %v234
    %974 = vmatprep.mubr.f32.mxu0 %v835
    %975 = vmatmul.mubr.f32.gmra.mxu0 %v909
    %v976 = vpop.f32.mrf.mxu0
    %v977 = vadd.f32 %v255, %v976
    %v978 = vpop.f32.mrf.mxu0
    %979 = vdwg.mxu0
    %v980 = vtanh.pop %v977
    %s981 = scalar_lea.vmem [#allocation2], 40
    %v982 = vld [vmem:[%s981] sm:$0xff]
    %983 = vmatprep.subr.mxu0 0.0
    %984 = vmatpush1.msra.mxu0 %v217
    %985 = vmatprep.subr.mxu0 0.0
    %986 = vmatpush1.msra.mxu0 %v216
    %987 = vmatprep.subr.mxu0 0.0
    %988 = vmatpush1.msra.mxu0 %v215
    %989 = vmatprep.subr.mxu0 0.0
    %990 = vmatpush1.msra.mxu0 %v214
    %991 = vmatprep.subr.mxu0 0.0
    %992 = vmatpush1.msra.mxu0 %v213
    %993 = vmatprep.subr.mxu0 0.0
    %994 = vmatpush1.msra.mxu0 %v212
    %995 = vmatprep.subr.mxu0 0.0
    %996 = vmatpush1.msra.mxu0 %v211
    %997 = vmatprep.subr.mxu0 0.0
    %998 = vmatpush1.msra.mxu0 %v210
    %999 = vmatprep.subr.mxu0 0.0
    %1000 = vmatpush1.msra.mxu0 %v209
    %1001 = vmatprep.subr.mxu0 0.0
    %1002 = vmatpush1.msra.mxu0 %v208
    %1003 = vmatprep.subr.mxu0 0.0
    %1004 = vmatpush1.msra.mxu0 %v207
    %1005 = vmatprep.subr.mxu0 0.0
    %1006 = vmatpush1.msra.mxu0 %v206
    %1007 = vmatprep.subr.mxu0 0.0
    %1008 = vmatpush1.msra.mxu0 %v205
    %1009 = vmatprep.subr.mxu0 0.0
    %1010 = vmatpush1.msra.mxu0 %v204
    %1011 = vmatprep.subr.mxu0 0.0
    %1012 = vmatpush1.msra.mxu0 %v203
    %1013 = vmatprep.subr.mxu0 0.0
    %1014 = vmatpush1.msra.mxu0 %v202
    %1015 = vmatprep.subr.mxu0 0.0
    %1016 = vmatpush2.msra.mxu0 0.0
    %1017 = vmatprep.subr.mxu0 0.0
    %1018 = vmatpush2.msra.mxu0 0.0
    %1019 = vmatprep.subr.mxu0 0.0
    %1020 = vmatpush2.msra.mxu0 0.0
    %1021 = vmatprep.subr.mxu0 0.0
    %1022 = vmatpush2.msra.mxu0 0.0
    %1023 = vmatprep.subr.mxu0 0.0
    %1024 = vmatpush2.msra.mxu0 0.0
    %1025 = vmatprep.subr.mxu0 0.0
    %1026 = vmatpush2.msra.mxu0 0.0
    %1027 = vmatprep.subr.mxu0 0.0
    %1028 = vmatpush2.msra.mxu0 0.0
    %1029 = vmatprep.subr.mxu0 0.0
    %1030 = vmatpush2.msra.mxu0 0.0
    %1031 = vmatprep.subr.mxu0 0.0
    %1032 = vmatpush2.msra.mxu0 0.0
    %1033 = vmatprep.subr.mxu0 0.0
    %1034 = vmatpush2.msra.mxu0 0.0
    %1035 = vmatprep.subr.mxu0 0.0
    %1036 = vmatpush2.msra.mxu0 0.0
    %1037 = vmatprep.subr.mxu0 0.0
    %1038 = vmatpush2.msra.mxu0 0.0
    %1039 = vmatprep.subr.mxu0 0.0
    %1040 = vmatpush2.msra.mxu0 0.0
    %1041 = vmatprep.subr.mxu0 0.0
    %1042 = vmatpush2.msra.mxu0 0.0
    %1043 = vmatprep.subr.mxu0 0.0
    %1044 = vmatpush2.msra.mxu0 0.0
    %1045 = vmatprep.subr.mxu0 0.0
    %1046 = vmatpush2.msra.mxu0 0.0
    %1047 = vmatprep.mubr.f32.mxu0 0.0
    %1048 = vmatmul.mubr.f32.gmra.mxu0 %v909
    %v1049 = vpop.f32.mrf.mxu0
    %v1050 = vadd.f32 0.0, %v1049
    %v1051 = vpop.f32.mrf.mxu0
    %1052 = vdwg.mxu0
    %v1053 = vadd.f32 %v982, %v1050
    %v1054 = vtanh.pop %v1053
    %1055 = vmatprep.subr.mxu0 0.0
    %1056 = vmatpush1.msra.mxu0 %v233
    %1057 = vmatprep.subr.mxu0 0.0
    %1058 = vmatpush1.msra.mxu0 %v232
    %1059 = vmatprep.subr.mxu0 0.0
    %1060 = vmatpush1.msra.mxu0 %v231
    %1061 = vmatprep.subr.mxu0 0.0
    %1062 = vmatpush1.msra.mxu0 %v230
    %1063 = vmatprep.subr.mxu0 0.0
    %1064 = vmatpush1.msra.mxu0 %v229
    %1065 = vmatprep.subr.mxu0 0.0
    %1066 = vmatpush1.msra.mxu0 %v228
    %1067 = vmatprep.subr.mxu0 0.0
    %1068 = vmatpush1.msra.mxu0 %v227
    %1069 = vmatprep.subr.mxu0 0.0
    %1070 = vmatpush1.msra.mxu0 %v226
    %1071 = vmatprep.subr.mxu0 0.0
    %1072 = vmatpush1.msra.mxu0 %v225
    %1073 = vmatprep.subr.mxu0 0.0
    %1074 = vmatpush1.msra.mxu0 %v224
    %1075 = vmatprep.subr.mxu0 0.0
    %1076 = vmatpush1.msra.mxu0 %v223
    %1077 = vmatprep.subr.mxu0 0.0
    %1078 = vmatpush1.msra.mxu0 %v222
    %1079 = vmatprep.subr.mxu0 0.0
    %1080 = vmatpush1.msra.mxu0 %v221
    %1081 = vmatprep.subr.mxu0 0.0
    %1082 = vmatpush1.msra.mxu0 %v220
    %1083 = vmatprep.subr.mxu0 0.0
    %1084 = vmatpush1.msra.mxu0 %v219
    %1085 = vmatprep.subr.mxu0 0.0
    %1086 = vmatpush1.msra.mxu0 %v218
    %1087 = vmatprep.subr.mxu0 0.0
    %1088 = vmatpush2.msra.mxu0 %v249
    %1089 = vmatprep.subr.mxu0 0.0
    %1090 = vmatpush2.msra.mxu0 %v248
    %1091 = vmatprep.subr.mxu0 0.0
    %1092 = vmatpush2.msra.mxu0 %v247
    %1093 = vmatprep.subr.mxu0 0.0
    %1094 = vmatpush2.msra.mxu0 %v246
    %1095 = vmatprep.subr.mxu0 0.0
    %1096 = vmatpush2.msra.mxu0 %v245
    %1097 = vmatprep.subr.mxu0 0.0
    %1098 = vmatpush2.msra.mxu0 %v244
    %1099 = vmatprep.subr.mxu0 0.0
    %1100 = vmatpush2.msra.mxu0 %v243
    %1101 = vmatprep.subr.mxu0 0.0
    %1102 = vmatpush2.msra.mxu0 %v242
    %1103 = vmatprep.subr.mxu0 0.0
    %1104 = vmatpush2.msra.mxu0 %v241
    %1105 = vmatprep.subr.mxu0 0.0
    %1106 = vmatpush2.msra.mxu0 %v240
    %1107 = vmatprep.subr.mxu0 0.0
    %1108 = vmatpush2.msra.mxu0 %v239
    %1109 = vmatprep.subr.mxu0 0.0
    %1110 = vmatpush2.msra.mxu0 %v238
    %1111 = vmatprep.subr.mxu0 0.0
    %1112 = vmatpush2.msra.mxu0 %v237
    %1113 = vmatprep.subr.mxu0 0.0
    %1114 = vmatpush2.msra.mxu0 %v236
    %1115 = vmatprep.subr.mxu0 0.0
    %1116 = vmatpush2.msra.mxu0 %v235
    %1117 = vmatprep.subr.mxu0 0.0
    %1118 = vmatpush2.msra.mxu0 %v234
    %1119 = vmatprep.mubr.f32.mxu0 %v980
    %1120 = vmatmul.mubr.f32.gmra.mxu0 %v1054
    %v1121 = vpop.f32.mrf.mxu0
    %v1122 = vadd.f32 %v255, %v1121
    %v1123 = vpop.f32.mrf.mxu0
    %1124 = vdwg.mxu0
    %v1125 = vtanh.pop %v1122
    %s1126 = scalar_lea.vmem [#allocation2], 48
    %v1127 = vld [vmem:[%s1126] sm:$0xff]
    %1128 = vmatprep.subr.mxu0 0.0
    %1129 = vmatpush1.msra.mxu0 %v217
    %1130 = vmatprep.subr.mxu0 0.0
    %1131 = vmatpush1.msra.mxu0 %v216
    %1132 = vmatprep.subr.mxu0 0.0
    %1133 = vmatpush1.msra.mxu0 %v215
    %1134 = vmatprep.subr.mxu0 0.0
    %1135 = vmatpush1.msra.mxu0 %v214
    %1136 = vmatprep.subr.mxu0 0.0
    %1137 = vmatpush1.msra.mxu0 %v213
    %1138 = vmatprep.subr.mxu0 0.0
    %1139 = vmatpush1.msra.mxu0 %v212
    %1140 = vmatprep.subr.mxu0 0.0
    %1141 = vmatpush1.msra.mxu0 %v211
    %1142 = vmatprep.subr.mxu0 0.0
    %1143 = vmatpush1.msra.mxu0 %v210
    %1144 = vmatprep.subr.mxu0 0.0
    %1145 = vmatpush1.msra.mxu0 %v209
    %1146 = vmatprep.subr.mxu0 0.0
    %1147 = vmatpush1.msra.mxu0 %v208
    %1148 = vmatprep.subr.mxu0 0.0
    %1149 = vmatpush1.msra.mxu0 %v207
    %1150 = vmatprep.subr.mxu0 0.0
    %1151 = vmatpush1.msra.mxu0 %v206
    %1152 = vmatprep.subr.mxu0 0.0
    %1153 = vmatpush1.msra.mxu0 %v205
    %1154 = vmatprep.subr.mxu0 0.0
    %1155 = vmatpush1.msra.mxu0 %v204
    %1156 = vmatprep.subr.mxu0 0.0
    %1157 = vmatpush1.msra.mxu0 %v203
    %1158 = vmatprep.subr.mxu0 0.0
    %1159 = vmatpush1.msra.mxu0 %v202
    %1160 = vmatprep.subr.mxu0 0.0
    %1161 = vmatpush2.msra.mxu0 0.0
    %1162 = vmatprep.subr.mxu0 0.0
    %1163 = vmatpush2.msra.mxu0 0.0
    %1164 = vmatprep.subr.mxu0 0.0
    %1165 = vmatpush2.msra.mxu0 0.0
    %1166 = vmatprep.subr.mxu0 0.0
    %1167 = vmatpush2.msra.mxu0 0.0
    %1168 = vmatprep.subr.mxu0 0.0
    %1169 = vmatpush2.msra.mxu0 0.0
    %1170 = vmatprep.subr.mxu0 0.0
    %1171 = vmatpush2.msra.mxu0 0.0
    %1172 = vmatprep.subr.mxu0 0.0
    %1173 = vmatpush2.msra.mxu0 0.0
    %1174 = vmatprep.subr.mxu0 0.0
    %1175 = vmatpush2.msra.mxu0 0.0
    %1176 = vmatprep.subr.mxu0 0.0
    %1177 = vmatpush2.msra.mxu0 0.0
    %1178 = vmatprep.subr.mxu0 0.0
    %1179 = vmatpush2.msra.mxu0 0.0
    %1180 = vmatprep.subr.mxu0 0.0
    %1181 = vmatpush2.msra.mxu0 0.0
    %1182 = vmatprep.subr.mxu0 0.0
    %1183 = vmatpush2.msra.mxu0 0.0
    %1184 = vmatprep.subr.mxu0 0.0
    %1185 = vmatpush2.msra.mxu0 0.0
    %1186 = vmatprep.subr.mxu0 0.0
    %1187 = vmatpush2.msra.mxu0 0.0
    %1188 = vmatprep.subr.mxu0 0.0
    %1189 = vmatpush2.msra.mxu0 0.0
    %1190 = vmatprep.subr.mxu0 0.0
    %1191 = vmatpush2.msra.mxu0 0.0
    %1192 = vmatprep.mubr.f32.mxu0 0.0
    %1193 = vmatmul.mubr.f32.gmra.mxu0 %v1054
    %v1194 = vpop.f32.mrf.mxu0
    %v1195 = vadd.f32 0.0, %v1194
    %v1196 = vpop.f32.mrf.mxu0
    %1197 = vdwg.mxu0
    %v1198 = vadd.f32 %v1127, %v1195
    %v1199 = vtanh.pop %v1198
    %1200 = vmatprep.subr.mxu0 0.0
    %1201 = vmatpush1.msra.mxu0 %v233
    %1202 = vmatprep.subr.mxu0 0.0
    %1203 = vmatpush1.msra.mxu0 %v232
    %1204 = vmatprep.subr.mxu0 0.0
    %1205 = vmatpush1.msra.mxu0 %v231
    %1206 = vmatprep.subr.mxu0 0.0
    %1207 = vmatpush1.msra.mxu0 %v230
    %1208 = vmatprep.subr.mxu0 0.0
    %1209 = vmatpush1.msra.mxu0 %v229
    %1210 = vmatprep.subr.mxu0 0.0
    %1211 = vmatpush1.msra.mxu0 %v228
    %1212 = vmatprep.subr.mxu0 0.0
    %1213 = vmatpush1.msra.mxu0 %v227
    %1214 = vmatprep.subr.mxu0 0.0
    %1215 = vmatpush1.msra.mxu0 %v226
    %1216 = vmatprep.subr.mxu0 0.0
    %1217 = vmatpush1.msra.mxu0 %v225
    %1218 = vmatprep.subr.mxu0 0.0
    %1219 = vmatpush1.msra.mxu0 %v224
    %1220 = vmatprep.subr.mxu0 0.0
    %1221 = vmatpush1.msra.mxu0 %v223
    %1222 = vmatprep.subr.mxu0 0.0
    %1223 = vmatpush1.msra.mxu0 %v222
    %1224 = vmatprep.subr.mxu0 0.0
    %1225 = vmatpush1.msra.mxu0 %v221
    %1226 = vmatprep.subr.mxu0 0.0
    %1227 = vmatpush1.msra.mxu0 %v220
    %1228 = vmatprep.subr.mxu0 0.0
    %1229 = vmatpush1.msra.mxu0 %v219
    %1230 = vmatprep.subr.mxu0 0.0
    %1231 = vmatpush1.msra.mxu0 %v218
    %1232 = vmatprep.subr.mxu0 0.0
    %1233 = vmatpush2.msra.mxu0 %v249
    %1234 = vmatprep.subr.mxu0 0.0
    %1235 = vmatpush2.msra.mxu0 %v248
    %1236 = vmatprep.subr.mxu0 0.0
    %1237 = vmatpush2.msra.mxu0 %v247
    %1238 = vmatprep.subr.mxu0 0.0
    %1239 = vmatpush2.msra.mxu0 %v246
    %1240 = vmatprep.subr.mxu0 0.0
    %1241 = vmatpush2.msra.mxu0 %v245
    %1242 = vmatprep.subr.mxu0 0.0
    %1243 = vmatpush2.msra.mxu0 %v244
    %1244 = vmatprep.subr.mxu0 0.0
    %1245 = vmatpush2.msra.mxu0 %v243
    %1246 = vmatprep.subr.mxu0 0.0
    %1247 = vmatpush2.msra.mxu0 %v242
    %1248 = vmatprep.subr.mxu0 0.0
    %1249 = vmatpush2.msra.mxu0 %v241
    %1250 = vmatprep.subr.mxu0 0.0
    %1251 = vmatpush2.msra.mxu0 %v240
    %1252 = vmatprep.subr.mxu0 0.0
    %1253 = vmatpush2.msra.mxu0 %v239
    %1254 = vmatprep.subr.mxu0 0.0
    %1255 = vmatpush2.msra.mxu0 %v238
    %1256 = vmatprep.subr.mxu0 0.0
    %1257 = vmatpush2.msra.mxu0 %v237
    %1258 = vmatprep.subr.mxu0 0.0
    %1259 = vmatpush2.msra.mxu0 %v236
    %1260 = vmatprep.subr.mxu0 0.0
    %1261 = vmatpush2.msra.mxu0 %v235
    %1262 = vmatprep.subr.mxu0 0.0
    %1263 = vmatpush2.msra.mxu0 %v234
    %1264 = vmatprep.mubr.f32.mxu0 %v1125
    %1265 = vmatmul.mubr.f32.gmra.mxu0 %v1199
    %v1266 = vpop.f32.mrf.mxu0
    %v1267 = vadd.f32 %v255, %v1266
    %v1268 = vpop.f32.mrf.mxu0
    %1269 = vdwg.mxu0
    %v1270 = vtanh.pop %v1267
    %s1271 = scalar_lea.vmem [#allocation2], 56
    %v1272 = vld [vmem:[%s1271] sm:$0xff]
    %1273 = vmatprep.subr.mxu0 0.0
    %1274 = vmatpush1.msra.mxu0 %v217
    %1275 = vmatprep.subr.mxu0 0.0
    %1276 = vmatpush1.msra.mxu0 %v216
    %1277 = vmatprep.subr.mxu0 0.0
    %1278 = vmatpush1.msra.mxu0 %v215
    %1279 = vmatprep.subr.mxu0 0.0
    %1280 = vmatpush1.msra.mxu0 %v214
    %1281 = vmatprep.subr.mxu0 0.0
    %1282 = vmatpush1.msra.mxu0 %v213
    %1283 = vmatprep.subr.mxu0 0.0
    %1284 = vmatpush1.msra.mxu0 %v212
    %1285 = vmatprep.subr.mxu0 0.0
    %1286 = vmatpush1.msra.mxu0 %v211
    %1287 = vmatprep.subr.mxu0 0.0
    %1288 = vmatpush1.msra.mxu0 %v210
    %1289 = vmatprep.subr.mxu0 0.0
    %1290 = vmatpush1.msra.mxu0 %v209
    %1291 = vmatprep.subr.mxu0 0.0
    %1292 = vmatpush1.msra.mxu0 %v208
    %1293 = vmatprep.subr.mxu0 0.0
    %1294 = vmatpush1.msra.mxu0 %v207
    %1295 = vmatprep.subr.mxu0 0.0
    %1296 = vmatpush1.msra.mxu0 %v206
    %1297 = vmatprep.subr.mxu0 0.0
    %1298 = vmatpush1.msra.mxu0 %v205
    %1299 = vmatprep.subr.mxu0 0.0
    %1300 = vmatpush1.msra.mxu0 %v204
    %1301 = vmatprep.subr.mxu0 0.0
    %1302 = vmatpush1.msra.mxu0 %v203
    %1303 = vmatprep.subr.mxu0 0.0
    %1304 = vmatpush1.msra.mxu0 %v202
    %1305 = vmatprep.subr.mxu0 0.0
    %1306 = vmatpush2.msra.mxu0 0.0
    %1307 = vmatprep.subr.mxu0 0.0
    %1308 = vmatpush2.msra.mxu0 0.0
    %1309 = vmatprep.subr.mxu0 0.0
    %1310 = vmatpush2.msra.mxu0 0.0
    %1311 = vmatprep.subr.mxu0 0.0
    %1312 = vmatpush2.msra.mxu0 0.0
    %1313 = vmatprep.subr.mxu0 0.0
    %1314 = vmatpush2.msra.mxu0 0.0
    %1315 = vmatprep.subr.mxu0 0.0
    %1316 = vmatpush2.msra.mxu0 0.0
    %1317 = vmatprep.subr.mxu0 0.0
    %1318 = vmatpush2.msra.mxu0 0.0
    %1319 = vmatprep.subr.mxu0 0.0
    %1320 = vmatpush2.msra.mxu0 0.0
    %1321 = vmatprep.subr.mxu0 0.0
    %1322 = vmatpush2.msra.mxu0 0.0
    %1323 = vmatprep.subr.mxu0 0.0
    %1324 = vmatpush2.msra.mxu0 0.0
    %1325 = vmatprep.subr.mxu0 0.0
    %1326 = vmatpush2.msra.mxu0 0.0
    %1327 = vmatprep.subr.mxu0 0.0
    %1328 = vmatpush2.msra.mxu0 0.0
    %1329 = vmatprep.subr.mxu0 0.0
    %1330 = vmatpush2.msra.mxu0 0.0
    %1331 = vmatprep.subr.mxu0 0.0
    %1332 = vmatpush2.msra.mxu0 0.0
    %1333 = vmatprep.subr.mxu0 0.0
    %1334 = vmatpush2.msra.mxu0 0.0
    %1335 = vmatprep.subr.mxu0 0.0
    %1336 = vmatpush2.msra.mxu0 0.0
    %1337 = vmatprep.mubr.f32.mxu0 0.0
    %1338 = vmatmul.mubr.f32.gmra.mxu0 %v1199
    %v1339 = vpop.f32.mrf.mxu0
    %v1340 = vadd.f32 0.0, %v1339
    %v1341 = vpop.f32.mrf.mxu0
    %1342 = vdwg.mxu0
    %v1343 = vadd.f32 %v1272, %v1340
    %v1344 = vtanh.pop %v1343
    %1345 = vmatprep.subr.mxu0 0.0
    %1346 = vmatpush1.msra.mxu0 %v233
    %1347 = vmatprep.subr.mxu0 0.0
    %1348 = vmatpush1.msra.mxu0 %v232
    %1349 = vmatprep.subr.mxu0 0.0
    %1350 = vmatpush1.msra.mxu0 %v231
    %1351 = vmatprep.subr.mxu0 0.0
    %1352 = vmatpush1.msra.mxu0 %v230
    %1353 = vmatprep.subr.mxu0 0.0
    %1354 = vmatpush1.msra.mxu0 %v229
    %1355 = vmatprep.subr.mxu0 0.0
    %1356 = vmatpush1.msra.mxu0 %v228
    %1357 = vmatprep.subr.mxu0 0.0
    %1358 = vmatpush1.msra.mxu0 %v227
    %1359 = vmatprep.subr.mxu0 0.0
    %1360 = vmatpush1.msra.mxu0 %v226
    %1361 = vmatprep.subr.mxu0 0.0
    %1362 = vmatpush1.msra.mxu0 %v225
    %1363 = vmatprep.subr.mxu0 0.0
    %1364 = vmatpush1.msra.mxu0 %v224
    %1365 = vmatprep.subr.mxu0 0.0
    %1366 = vmatpush1.msra.mxu0 %v223
    %1367 = vmatprep.subr.mxu0 0.0
    %1368 = vmatpush1.msra.mxu0 %v222
    %1369 = vmatprep.subr.mxu0 0.0
    %1370 = vmatpush1.msra.mxu0 %v221
    %1371 = vmatprep.subr.mxu0 0.0
    %1372 = vmatpush1.msra.mxu0 %v220
    %1373 = vmatprep.subr.mxu0 0.0
    %1374 = vmatpush1.msra.mxu0 %v219
    %1375 = vmatprep.subr.mxu0 0.0
    %1376 = vmatpush1.msra.mxu0 %v218
    %1377 = vmatprep.subr.mxu0 0.0
    %1378 = vmatpush2.msra.mxu0 %v249
    %1379 = vmatprep.subr.mxu0 0.0
    %1380 = vmatpush2.msra.mxu0 %v248
    %1381 = vmatprep.subr.mxu0 0.0
    %1382 = vmatpush2.msra.mxu0 %v247
    %1383 = vmatprep.subr.mxu0 0.0
    %1384 = vmatpush2.msra.mxu0 %v246
    %1385 = vmatprep.subr.mxu0 0.0
    %1386 = vmatpush2.msra.mxu0 %v245
    %1387 = vmatprep.subr.mxu0 0.0
    %1388 = vmatpush2.msra.mxu0 %v244
    %1389 = vmatprep.subr.mxu0 0.0
    %1390 = vmatpush2.msra.mxu0 %v243
    %1391 = vmatprep.subr.mxu0 0.0
    %1392 = vmatpush2.msra.mxu0 %v242
    %1393 = vmatprep.subr.mxu0 0.0
    %1394 = vmatpush2.msra.mxu0 %v241
    %1395 = vmatprep.subr.mxu0 0.0
    %1396 = vmatpush2.msra.mxu0 %v240
    %1397 = vmatprep.subr.mxu0 0.0
    %1398 = vmatpush2.msra.mxu0 %v239
    %1399 = vmatprep.subr.mxu0 0.0
    %1400 = vmatpush2.msra.mxu0 %v238
    %1401 = vmatprep.subr.mxu0 0.0
    %1402 = vmatpush2.msra.mxu0 %v237
    %1403 = vmatprep.subr.mxu0 0.0
    %1404 = vmatpush2.msra.mxu0 %v236
    %1405 = vmatprep.subr.mxu0 0.0
    %1406 = vmatpush2.msra.mxu0 %v235
    %1407 = vmatprep.subr.mxu0 0.0
    %1408 = vmatpush2.msra.mxu0 %v234
    %1409 = vmatprep.mubr.f32.mxu0 %v1270
    %1410 = vmatmul.mubr.f32.gmra.mxu0 %v1344
    %v1411 = vpop.f32.mrf.mxu0
    %v1412 = vadd.f32 %v255, %v1411
    %v1413 = vpop.f32.mrf.mxu0
    %1414 = vdwg.mxu0
    %v1415 = vtanh.pop %v1412
    %v1416 = vld [vmem:[%s6] sm:$0xff]
    %v1417 = vld [vmem:[%s6 + $0x8] sm:$0xff]
    %v1418 = vld [vmem:[%s6 + $0x10] sm:$0xff]
    %v1419 = vld [vmem:[%s6 + $0x18] sm:$0xff]
    %v1420 = vld [vmem:[%s6 + $0x20] sm:$0xff]
    %v1421 = vld [vmem:[%s6 + $0x28] sm:$0xff]
    %v1422 = vld [vmem:[%s6 + $0x30] sm:$0xff]
    %v1423 = vld [vmem:[%s6 + $0x38] sm:$0xff]
    %v1424 = vld [vmem:[%s6 + $0x40] sm:$0xff]
    %v1425 = vld [vmem:[%s6 + $0x48] sm:$0xff]
    %v1426 = vld [vmem:[%s6 + $0x50] sm:$0xff]
    %v1427 = vld [vmem:[%s6 + $0x58] sm:$0xff]
    %v1428 = vld [vmem:[%s6 + $0x60] sm:$0xff]
    %v1429 = vld [vmem:[%s6 + $0x68] sm:$0xff]
    %v1430 = vld [vmem:[%s6 + $0x70] sm:$0xff]
    %v1431 = vld [vmem:[%s6 + $0x78] sm:$0xff]
    %v1432 = vld [vmem:[#allocation3] sm:$0x1]
    %v1434 = vlaneseq
    %v1435 = vshrl.u32 %v1434, 7
    %v1436 = vsub.s32 0, %v1435
    %v1437 = vrot.slane %v1432, %v1436
    %1439 = vmatprep.subr.mxu0 0.0
    %1440 = vmatpush1.msra.mxu0 %v1431
    %1441 = vmatprep.subr.mxu0 0.0
    %1442 = vmatpush1.msra.mxu0 %v1430
    %1443 = vmatprep.subr.mxu0 0.0
    %1444 = vmatpush1.msra.mxu0 %v1429
    %1445 = vmatprep.subr.mxu0 0.0
    %1446 = vmatpush1.msra.mxu0 %v1428
    %1447 = vmatprep.subr.mxu0 0.0
    %1448 = vmatpush1.msra.mxu0 %v1427
    %1449 = vmatprep.subr.mxu0 0.0
    %1450 = vmatpush1.msra.mxu0 %v1426
    %1451 = vmatprep.subr.mxu0 0.0
    %1452 = vmatpush1.msra.mxu0 %v1425
    %1453 = vmatprep.subr.mxu0 0.0
    %1454 = vmatpush1.msra.mxu0 %v1424
    %1455 = vmatprep.subr.mxu0 0.0
    %1456 = vmatpush1.msra.mxu0 %v1423
    %1457 = vmatprep.subr.mxu0 0.0
    %1458 = vmatpush1.msra.mxu0 %v1422
    %1459 = vmatprep.subr.mxu0 0.0
    %1460 = vmatpush1.msra.mxu0 %v1421
    %1461 = vmatprep.subr.mxu0 0.0
    %1462 = vmatpush1.msra.mxu0 %v1420
    %1463 = vmatprep.subr.mxu0 0.0
    %1464 = vmatpush1.msra.mxu0 %v1419
    %1465 = vmatprep.subr.mxu0 0.0
    %1466 = vmatpush1.msra.mxu0 %v1418
    %1467 = vmatprep.subr.mxu0 0.0
    %1468 = vmatpush1.msra.mxu0 %v1417
    %1469 = vmatprep.subr.mxu0 0.0
    %1470 = vmatpush1.msra.mxu0 %v1416
    %1471 = vmatprep.subr.mxu0 0.0
    %1472 = vmatpush2.msra.mxu0 0.0
    %1473 = vmatprep.subr.mxu0 0.0
    %1474 = vmatpush2.msra.mxu0 0.0
    %1475 = vmatprep.subr.mxu0 0.0
    %1476 = vmatpush2.msra.mxu0 0.0
    %1477 = vmatprep.subr.mxu0 0.0
    %1478 = vmatpush2.msra.mxu0 0.0
    %1479 = vmatprep.subr.mxu0 0.0
    %1480 = vmatpush2.msra.mxu0 0.0
    %1481 = vmatprep.subr.mxu0 0.0
    %1482 = vmatpush2.msra.mxu0 0.0
    %1483 = vmatprep.subr.mxu0 0.0
    %1484 = vmatpush2.msra.mxu0 0.0
    %1485 = vmatprep.subr.mxu0 0.0
    %1486 = vmatpush2.msra.mxu0 0.0
    %1487 = vmatprep.subr.mxu0 0.0
    %1488 = vmatpush2.msra.mxu0 0.0
    %1489 = vmatprep.subr.mxu0 0.0
    %1490 = vmatpush2.msra.mxu0 0.0
    %1491 = vmatprep.subr.mxu0 0.0
    %1492 = vmatpush2.msra.mxu0 0.0
    %1493 = vmatprep.subr.mxu0 0.0
    %1494 = vmatpush2.msra.mxu0 0.0
    %1495 = vmatprep.subr.mxu0 0.0
    %1496 = vmatpush2.msra.mxu0 0.0
    %1497 = vmatprep.subr.mxu0 0.0
    %1498 = vmatpush2.msra.mxu0 0.0
    %1499 = vmatprep.subr.mxu0 0.0
    %1500 = vmatpush2.msra.mxu0 0.0
    %1501 = vmatprep.subr.mxu0 0.0
    %1502 = vmatpush2.msra.mxu0 0.0
    %1503 = vmatprep.mubr.f32.mxu0 0.0
    %1504 = vmatmul.mubr.f32.gmra.mxu0 %v1415
    %v1505 = vpop.f32.mrf.mxu0
    %v1506 = vadd.f32 %v1437, %v1505
    %v1507 = vpop.f32.mrf.mxu0
    %1508 = vdwg.mxu0
    %vm1509 = vcmask 7168
    %1510 = vst.msk [vmem:[%s8] sm:$0xff] %vm1509, %v1506
    // Predicated region
    $region38: #{tpu_custom_call.1} parent=1 // pred_check
      _
    $region39: #{tpu_custom_call.1} parent=1 // pred_check_branch
      %1512 = sbr.rel (0) target = $region41
    $region40: #{tpu_custom_call.1} parent=1 // pred_region
      _
    $region41: #{tpu_custom_call.1} parent=1 // pred_fallthru
      _
    // Predicated region
    $region42: #{tpu_custom_call.1} parent=1 // pred_check
      _
    $region43: #{tpu_custom_call.1} parent=1 // pred_check_branch
      %1514 = sbr.rel (0) target = $region45
    $region44: #{tpu_custom_call.1} parent=1 // pred_region
      _
    $region45: #{tpu_custom_call.1} parent=1 // pred_fallthru
      _
    %1515 = vsyncpa [#allocation5], 1

</llo_original>
